<compile_context>
chip_gen: v5e
topology: v5e:2x2
jax: 0.10.0
libtpu: 0.0.40
codegen_flags: <defaults>
</compile_context>

<pallas_src>
import math

import jax
import jax.numpy as jnp
from jax.experimental import pallas as pl
from jax.experimental.pallas import tpu as pltpu

_C1 = math.sqrt(2.0 / math.pi)   # sqrt(2/pi)
_C2 = _C1 * 0.044715             # folded constant


def _tanh_gelu(x):
    # 0.5*x*(1+tanh(sqrt(2/pi)*(x+0.044715*x^3)))
    #   = 0.5*x*(1+tanh(x*(C1 + C2*x*x)))   (reuse x*x, fold constants)
    x_sq = x * x
    t = jnp.tanh(x * (_C1 + _C2 * x_sq))
    return 0.5 * x * (1.0 + t)


def ffn_kernel(x_ref, w1_ref, b1_ref, w2_ref, b2_ref, o_ref):
    """Fused Linear -> GELU(tanh) -> Linear for one row tile (bf16 MXU, f32 acc)."""
    x = x_ref[...].astype(jnp.bfloat16)                               # [TM, dim]
    h = jnp.dot(x, w1_ref[...], preferred_element_type=jnp.float32) + b1_ref[...]
    g = _tanh_gelu(h)                                                 # [TM, hidden] f32
    # TODO(synk): nn.Dropout(p=0.0) is an identity (also identity in eval mode);
    # training-mode dropout with p>0 would need pltpu.prng_seed/prng_random_bits.
    y = jnp.dot(g.astype(jnp.bfloat16), w2_ref[...],
                preferred_element_type=jnp.float32) + b2_ref[...]
    o_ref[...] = y.astype(o_ref.dtype)                                # [TM, dim]


def _round_up(v, m):
    return ((v + m - 1) // m) * m


def _choose_row_tile(m, dim, hidden, block_rows, weight_bytes):
    """Pick a sublane-aligned row tile that fits a conservative VMEM budget and
    divides the (8-aligned) row count whenever possible, so no whole-array
    pad / slice HBM passes are needed."""
    # Bytes that scale with TM: double-buffered f32 in/out tiles + f32 h/g intermediates.
    per_row = 4 * dim * 4 + 2 * hidden * 4
    budget = 24 * 1024 * 1024 - weight_bytes        # conservative (v7x: 64 MiB/TC physical)
    cap = max(8, min(block_rows, budget // max(per_row, 1)))
    cap = max(8, (cap // 8) * 8)

    m8 = _round_up(max(m, 1), 8)
    if m8 <= cap:
        return m8, m8                               # single tile (pads at most 7 rows)
    best = 8
    for tm in range(cap, 7, -8):                    # largest multiple-of-8 divisor of m8
        if m8 % tm == 0:
            best = tm
            break
    if best >= max(64, cap // 4):
        return best, m8                             # no padding needed when m % 8 == 0
    # Only awkward divisors exist: pad up to a multiple of the full cap instead.
    return cap, _round_up(m8, cap)


def feedforward_forward(x, params, *, block_rows=256):
    """x: [..., dim]; params: (w1_t [dim,hidden], b1 [1,hidden], w2_t [hidden,dim], b2 [1,dim])."""
    w1_t, b1, w2_t, b2 = params
    dim = x.shape[-1]
    hidden = w1_t.shape[1]
    assert w1_t.shape == (dim, hidden) and w2_t.shape == (hidden, dim)

    # bf16 weights for the MXU; biases stay f32 (added after f32 accumulation).
    w1_bf = w1_t.astype(jnp.bfloat16)
    w2_bf = w2_t.astype(jnp.bfloat16)
    b1_f = b1.astype(jnp.float32)
    b2_f = b2.astype(jnp.float32)

    lead_shape = x.shape[:-1]
    x2 = x.reshape(-1, dim)
    m = x2.shape[0]

    weight_bytes = (dim * hidden + hidden * dim) * 2 + (hidden + dim) * 4
    tm, m_pad = _choose_row_tile(m, dim, hidden, block_rows, weight_bytes)
    if m_pad != m:
        x2 = jnp.pad(x2, ((0, m_pad - m), (0, 0)))

    grid = (m_pad // tm,)

    # Advisory cost estimate (2 matmuls + gelu elementwise) so XLA doesn't treat
    # the custom call as free when scheduling the surrounding reshape/pad/slice.
    cost = pl.CostEstimate(
        flops=int(4 * m_pad * dim * hidden + 8 * m_pad * hidden),
        transcendentals=int(m_pad * hidden),
        bytes_accessed=int(x2.size * x2.dtype.itemsize + weight_bytes
                           + m_pad * dim * x.dtype.itemsize),
    )

    # Explicit scoped-VMEM limit: above v5e's ~16 MiB default, below v7x's 64 MiB/TC.
    vmem_need = (2 * weight_bytes                    # weights even if double-buffered
                 + 4 * tm * dim * 4                  # double-buffered in/out tiles (f32)
                 + 4 * tm * hidden * 4)              # h/g intermediates + headroom
    vmem_limit = int(min(max(2 * vmem_need, 32 * 1024 * 1024), 60 * 1024 * 1024))

    def _call(single_buffer_weights):
        wkw = ({"pipeline_mode": pl.Buffered(buffer_count=1)}
               if single_buffer_weights else {})
        return pl.pallas_call(
            ffn_kernel,
            out_shape=jax.ShapeDtypeStruct((m_pad, dim), x.dtype),
            grid_spec=pltpu.PrefetchScalarGridSpec(
                num_scalar_prefetch=0,
                grid=grid,
                in_specs=[
                    pl.BlockSpec((tm, dim), lambda i: (i, 0)),               # x row tile
                    pl.BlockSpec((dim, hidden), lambda i: (0, 0), **wkw),    # W1^T (resident)
                    pl.BlockSpec((1, hidden), lambda i: (0, 0), **wkw),      # b1
                    pl.BlockSpec((hidden, dim), lambda i: (0, 0), **wkw),    # W2^T (resident)
                    pl.BlockSpec((1, dim), lambda i: (0, 0), **wkw),         # b2
                ],
                out_specs=pl.BlockSpec((tm, dim), lambda i: (i, 0)),
            ),
            compiler_params=pltpu.CompilerParams(
                dimension_semantics=("parallel",),
                vmem_limit_bytes=vmem_limit,
            ),
            cost_estimate=cost,
        )(x2, w1_bf, b1_f, w2_bf, b2_f)

    # TODO(synk): for layers where the 2*dim*hidden bf16 weights exceed ~24 MiB
    # (v7x per-TC budget), switch to a second grid axis over hidden with an f32
    # accumulator scratch (pl.when init/finalize) instead of full weight residency.
    try:
        out = _call(single_buffer_weights=True)
    except Exception:
        # Fallback for jax versions without single-buffer pipeline_mode support.
        out = _call(single_buffer_weights=False)

    if m_pad != m:
        out = out[:m]
    return out.reshape(*lead_shape, dim)


def init_params(key, dim, hidden_dim):
    """nn.Linear default init (uniform +/- 1/sqrt(fan_in)); weights stored transposed, f32."""
    params = []
    for fan_in, fan_out in ((dim, hidden_dim), (hidden_dim, dim)):
        key, kw, kb = jax.random.split(key, 3)
        bound = 1.0 / math.sqrt(fan_in)
        w_t = jax.random.uniform(kw, (fan_in, fan_out), jnp.float32, -bound, bound)
        b = jax.random.uniform(kb, (1, fan_out), jnp.float32, -bound, bound)
        params.append(w_t)
        params.append(b)
    return tuple(params)  # (w1_t, b1, w2_t, b2)


def feedforward_reference(x, params):
    """Plain-JAX f32 reference matching the PyTorch forward (dropout p=0 -> identity)."""
    w1_t, b1, w2_t, b2 = params
    h = x.astype(jnp.float32) @ w1_t + b1
    g = 0.5 * h * (1.0 + jnp.tanh(_C1 * (h + 0.044715 * h ** 3)))
    return g @ w2_t + b2


if __name__ == "__main__":
    key = jax.random.PRNGKey(0)

    # Lane-dense small shapes: batch=4, seq=128, dim=128, hidden=256.
    # m = 512 rows -> TM = 256, grid = (2,): no padding, even step count for v7x.
    B, S, DIM, HIDDEN = 4, 128, 128, 256

    key, kx, kp = jax.random.split(key, 3)
    x = jax.random.normal(kx, (B, S, DIM), jnp.float32)
    params = init_params(kp, DIM, HIDDEN)

    out = jax.block_until_ready(feedforward_forward(x, params))
    ref = feedforward_reference(x, params)

    assert out.shape == (B, S, DIM), out.shape
    # bf16 MXU inputs with f32 accumulation: ~1e-2-level absolute error expected.
    err = float(jnp.max(jnp.abs(out - ref)))
    assert err < 5e-2, err

    print("KERNEL_OK")
</pallas_src>

<mosaic_0001>
module attributes {stable_mosaic.version = 11 : i64} {
  func.func @ffn_kernel(%arg0: i32, %arg1: memref<256x128xf32, #tpu.memory_space<vmem>>, %arg2: memref<128x256xbf16, #tpu.memory_space<vmem>>, %arg3: memref<1x256xf32, #tpu.memory_space<vmem>>, %arg4: memref<256x128xbf16, #tpu.memory_space<vmem>>, %arg5: memref<1x128xf32, #tpu.memory_space<vmem>>, %arg6: memref<256x128xf32, #tpu.memory_space<vmem>>) attributes {dimension_semantics = [#tpu.dimension_semantics<parallel>], iteration_bounds = array<i64: 2>, scalar_prefetch = 0 : i64, scratch_operands = 0 : i64, tpu.core_type = #tpu.core_type<tc>, window_params = [{transform_indices = @transform_0, window_bounds = array<i64: 256, 128>}, {pipeline_mode = #tpu.pipeline_mode<synchronous>, transform_indices = @transform_1, window_bounds = array<i64: 128, 256>}, {pipeline_mode = #tpu.pipeline_mode<synchronous>, transform_indices = @transform_2, window_bounds = array<i64: 1, 256>}, {pipeline_mode = #tpu.pipeline_mode<synchronous>, transform_indices = @transform_3, window_bounds = array<i64: 256, 128>}, {pipeline_mode = #tpu.pipeline_mode<synchronous>, transform_indices = @transform_4, window_bounds = array<i64: 1, 128>}, {transform_indices = @transform_5, window_bounds = array<i64: 256, 128>}]} {
    %c0 = arith.constant 0 : index
    %c0_0 = arith.constant 0 : index
    %0 = vector.load %arg1[%c0, %c0_0] : memref<256x128xf32, #tpu.memory_space<vmem>>, vector<256x128xf32>
    %1 = arith.truncf %0 : vector<256x128xf32> to vector<256x128xbf16>
    %c0_1 = arith.constant 0 : index
    %c0_2 = arith.constant 0 : index
    %2 = vector.load %arg2[%c0_1, %c0_2] : memref<128x256xbf16, #tpu.memory_space<vmem>>, vector<128x256xbf16>
    %cst = arith.constant dense<0.000000e+00> : vector<256x256xf32>
    %3 = tpu.matmul %1, %2, %cst {dimension_numbers = #tpu.dot_dimension_numbers<[1], [0], [0], [1], [0, 0, 1, 1], [], []>} : vector<256x128xbf16>, vector<128x256xbf16>, vector<256x256xf32> -> vector<256x256xf32>
    %c0_3 = arith.constant 0 : index
    %c0_4 = arith.constant 0 : index
    %4 = vector.load %arg3[%c0_3, %c0_4] : memref<1x256xf32, #tpu.memory_space<vmem>>, vector<1x256xf32>
    %5 = vector.broadcast %4 : vector<1x256xf32> to vector<256x256xf32>
    %6 = arith.addf %3, %5 : vector<256x256xf32>
    %7 = arith.mulf %6, %6 : vector<256x256xf32>
    %cst_5 = arith.constant 0.0356774069 : f32
    %8 = vector.broadcast %cst_5 : f32 to vector<256x256xf32>
    %9 = arith.mulf %8, %7 : vector<256x256xf32>
    %cst_6 = arith.constant 0.797884583 : f32
    %10 = vector.broadcast %cst_6 : f32 to vector<256x256xf32>
    %11 = arith.addf %10, %9 : vector<256x256xf32>
    %12 = arith.mulf %6, %11 : vector<256x256xf32>
    %13 = math.tanh %12 : vector<256x256xf32>
    %cst_7 = arith.constant 5.000000e-01 : f32
    %14 = vector.broadcast %cst_7 : f32 to vector<256x256xf32>
    %15 = arith.mulf %14, %6 : vector<256x256xf32>
    %cst_8 = arith.constant 1.000000e+00 : f32
    %16 = vector.broadcast %cst_8 : f32 to vector<256x256xf32>
    %17 = arith.addf %16, %13 : vector<256x256xf32>
    %18 = arith.mulf %15, %17 : vector<256x256xf32>
    %19 = arith.truncf %18 : vector<256x256xf32> to vector<256x256xbf16>
    %c0_9 = arith.constant 0 : index
    %c0_10 = arith.constant 0 : index
    %20 = vector.load %arg4[%c0_9, %c0_10] : memref<256x128xbf16, #tpu.memory_space<vmem>>, vector<256x128xbf16>
    %cst_11 = arith.constant dense<0.000000e+00> : vector<256x128xf32>
    %21 = tpu.matmul %19, %20, %cst_11 {dimension_numbers = #tpu.dot_dimension_numbers<[1], [0], [0], [1], [0, 0, 1, 1], [], []>} : vector<256x256xbf16>, vector<256x128xbf16>, vector<256x128xf32> -> vector<256x128xf32>
    %c0_12 = arith.constant 0 : index
    %c0_13 = arith.constant 0 : index
    %22 = vector.load %arg5[%c0_12, %c0_13] : memref<1x128xf32, #tpu.memory_space<vmem>>, vector<1x128xf32>
    %23 = vector.broadcast %22 : vector<1x128xf32> to vector<256x128xf32>
    %24 = arith.addf %21, %23 : vector<256x128xf32>
    %c0_14 = arith.constant 0 : index
    %c0_15 = arith.constant 0 : index
    %25 = vector.load %arg6[%c0_14, %c0_15] : memref<256x128xf32, #tpu.memory_space<vmem>>, vector<256x128xf32>
    tpu.vector_store %arg6[%c0_14, %c0_15], %24 {strides = array<i32>} : memref<256x128xf32, #tpu.memory_space<vmem>>, vector<256x128xf32>,
    return
  }
  func.func @transform_0(%arg0: i32) -> (i32, i32) {
    %c0_i32 = arith.constant 0 : i32
    %c0_i32_0 = arith.constant 0 : i32
    return %arg0, %c0_i32 : i32, i32
  }
  func.func @transform_1(%arg0: i32) -> (i32, i32) {
    %c0_i32 = arith.constant 0 : i32
    %c0_i32_0 = arith.constant 0 : i32
    %c0_i32_1 = arith.constant 0 : i32
    return %c0_i32, %c0_i32_0 : i32, i32
  }
  func.func @transform_2(%arg0: i32) -> (i32, i32) {
    %c0_i32 = arith.constant 0 : i32
    %c0_i32_0 = arith.constant 0 : i32
    %c0_i32_1 = arith.constant 0 : i32
    return %c0_i32, %c0_i32_0 : i32, i32
  }
  func.func @transform_3(%arg0: i32) -> (i32, i32) {
    %c0_i32 = arith.constant 0 : i32
    %c0_i32_0 = arith.constant 0 : i32
    %c0_i32_1 = arith.constant 0 : i32
    return %c0_i32, %c0_i32_0 : i32, i32
  }
  func.func @transform_4(%arg0: i32) -> (i32, i32) {
    %c0_i32 = arith.constant 0 : i32
    %c0_i32_0 = arith.constant 0 : i32
    %c0_i32_1 = arith.constant 0 : i32
    return %c0_i32, %c0_i32_0 : i32, i32
  }
  func.func @transform_5(%arg0: i32) -> (i32, i32) {
    %c0_i32 = arith.constant 0 : i32
    %c0_i32_0 = arith.constant 0 : i32
    return %arg0, %c0_i32 : i32, i32
  }
}

module attributes {stable_mosaic.version = 11 : i64} {
  func.func @ffn_kernel(%arg0: i32, %arg1: memref<256x128xf32, #tpu.memory_space<vmem>>, %arg2: memref<128x256xbf16, #tpu.memory_space<vmem>>, %arg3: memref<1x256xf32, #tpu.memory_space<vmem>>, %arg4: memref<256x128xbf16, #tpu.memory_space<vmem>>, %arg5: memref<1x128xf32, #tpu.memory_space<vmem>>, %arg6: memref<256x128xf32, #tpu.memory_space<vmem>>) attributes {dimension_semantics = [#tpu.dimension_semantics<parallel>], iteration_bounds = array<i64: 2>, scalar_prefetch = 0 : i64, scratch_operands = 0 : i64, tpu.core_type = #tpu.core_type<tc>, window_params = [{transform_indices = @transform_0, window_bounds = array<i64: 256, 128>}, {pipeline_mode = #tpu.pipeline_mode<synchronous>, transform_indices = @transform_1, window_bounds = array<i64: 128, 256>}, {pipeline_mode = #tpu.pipeline_mode<synchronous>, transform_indices = @transform_2, window_bounds = array<i64: 1, 256>}, {pipeline_mode = #tpu.pipeline_mode<synchronous>, transform_indices = @transform_3, window_bounds = array<i64: 256, 128>}, {pipeline_mode = #tpu.pipeline_mode<synchronous>, transform_indices = @transform_4, window_bounds = array<i64: 1, 128>}, {transform_indices = @transform_5, window_bounds = array<i64: 256, 128>}]} {
    %c0 = arith.constant 0 : index
    %c0_0 = arith.constant 0 : index
    %0 = vector.load %arg1[%c0, %c0_0] : memref<256x128xf32, #tpu.memory_space<vmem>>, vector<256x128xf32>
    %1 = arith.truncf %0 : vector<256x128xf32> to vector<256x128xbf16>
    %c0_1 = arith.constant 0 : index
    %c0_2 = arith.constant 0 : index
    %2 = vector.load %arg2[%c0_1, %c0_2] : memref<128x256xbf16, #tpu.memory_space<vmem>>, vector<128x256xbf16>
    %cst = arith.constant dense<0.000000e+00> : vector<256x256xf32>
    %3 = tpu.matmul %1, %2, %cst {dimension_numbers = #tpu.dot_dimension_numbers<[1], [0], [0], [1], [0, 0, 1, 1], [], []>} : vector<256x128xbf16>, vector<128x256xbf16>, vector<256x256xf32> -> vector<256x256xf32>
    %c0_3 = arith.constant 0 : index
    %c0_4 = arith.constant 0 : index
    %4 = vector.load %arg3[%c0_3, %c0_4] : memref<1x256xf32, #tpu.memory_space<vmem>>, vector<1x256xf32>
    %5 = vector.broadcast %4 : vector<1x256xf32> to vector<256x256xf32>
    %6 = arith.addf %3, %5 : vector<256x256xf32>
    %7 = arith.mulf %6, %6 : vector<256x256xf32>
    %cst_5 = arith.constant 0.0356774069 : f32
    %8 = vector.broadcast %cst_5 : f32 to vector<256x256xf32>
    %9 = arith.mulf %8, %7 : vector<256x256xf32>
    %cst_6 = arith.constant 0.797884583 : f32
    %10 = vector.broadcast %cst_6 : f32 to vector<256x256xf32>
    %11 = arith.addf %10, %9 : vector<256x256xf32>
    %12 = arith.mulf %6, %11 : vector<256x256xf32>
    %13 = math.tanh %12 : vector<256x256xf32>
    %cst_7 = arith.constant 5.000000e-01 : f32
    %14 = vector.broadcast %cst_7 : f32 to vector<256x256xf32>
    %15 = arith.mulf %14, %6 : vector<256x256xf32>
    %cst_8 = arith.constant 1.000000e+00 : f32
    %16 = vector.broadcast %cst_8 : f32 to vector<256x256xf32>
    %17 = arith.addf %16, %13 : vector<256x256xf32>
    %18 = arith.mulf %15, %17 : vector<256x256xf32>
    %19 = arith.truncf %18 : vector<256x256xf32> to vector<256x256xbf16>
    %c0_9 = arith.constant 0 : index
    %c0_10 = arith.constant 0 : index
    %20 = vector.load %arg4[%c0_9, %c0_10] : memref<256x128xbf16, #tpu.memory_space<vmem>>, vector<256x128xbf16>
    %cst_11 = arith.constant dense<0.000000e+00> : vector<256x128xf32>
    %21 = tpu.matmul %19, %20, %cst_11 {dimension_numbers = #tpu.dot_dimension_numbers<[1], [0], [0], [1], [0, 0, 1, 1], [], []>} : vector<256x256xbf16>, vector<256x128xbf16>, vector<256x128xf32> -> vector<256x128xf32>
    %c0_12 = arith.constant 0 : index
    %c0_13 = arith.constant 0 : index
    %22 = vector.load %arg5[%c0_12, %c0_13] : memref<1x128xf32, #tpu.memory_space<vmem>>, vector<1x128xf32>
    %23 = vector.broadcast %22 : vector<1x128xf32> to vector<256x128xf32>
    %24 = arith.addf %21, %23 : vector<256x128xf32>
    %c0_14 = arith.constant 0 : index
    %c0_15 = arith.constant 0 : index
    %25 = vector.load %arg6[%c0_14, %c0_15] : memref<256x128xf32, #tpu.memory_space<vmem>>, vector<256x128xf32>
    tpu.vector_store %arg6[%c0_14, %c0_15], %24 {strides = array<i32>} : memref<256x128xf32, #tpu.memory_space<vmem>>, vector<256x128xf32>,
    return
  }
  func.func @transform_0(%arg0: i32) -> (i32, i32) {
    %c0_i32 = arith.constant 0 : i32
    %c0_i32_0 = arith.constant 0 : i32
    return %arg0, %c0_i32 : i32, i32
  }
  func.func @transform_1(%arg0: i32) -> (i32, i32) {
    %c0_i32 = arith.constant 0 : i32
    %c0_i32_0 = arith.constant 0 : i32
    %c0_i32_1 = arith.constant 0 : i32
    return %c0_i32, %c0_i32_0 : i32, i32
  }
  func.func @transform_2(%arg0: i32) -> (i32, i32) {
    %c0_i32 = arith.constant 0 : i32
    %c0_i32_0 = arith.constant 0 : i32
    %c0_i32_1 = arith.constant 0 : i32
    return %c0_i32, %c0_i32_0 : i32, i32
  }
  func.func @transform_3(%arg0: i32) -> (i32, i32) {
    %c0_i32 = arith.constant 0 : i32
    %c0_i32_0 = arith.constant 0 : i32
    %c0_i32_1 = arith.constant 0 : i32
    return %c0_i32, %c0_i32_0 : i32, i32
  }
  func.func @transform_4(%arg0: i32) -> (i32, i32) {
    %c0_i32 = arith.constant 0 : i32
    %c0_i32_0 = arith.constant 0 : i32
    %c0_i32_1 = arith.constant 0 : i32
    return %c0_i32, %c0_i32_0 : i32, i32
  }
  func.func @transform_5(%arg0: i32) -> (i32, i32) {
    %c0_i32 = arith.constant 0 : i32
    %c0_i32_0 = arith.constant 0 : i32
    return %arg0, %c0_i32 : i32, i32
  }
}

</mosaic_0001>

<llo_original>
// kernel: tpu_custom_call.1
$region0: #{tpu_custom_call.1}
  #allocation0 [shape = 'u32[]', space=smem, size = 0x4, offset = 0x4, fixed_abs, tag = 'smem constant byte address 0x4 - core index']
  #allocation1 [shape = 'u32[72,128]{1,0:T(1,128)}', space=vmem, size = 0x9000, scoped, tag = 'internal scratch']
  %s0 = inlined_call_operand.hbm [shape: f32[512,128], index: 0, kind: input, shape index: {}]
  %s1 = inlined_call_operand.hbm [shape: bf16[128,256], index: 1, kind: input, shape index: {}]
  %s2 = inlined_call_operand.hbm [shape: f32[1,256], index: 2, kind: input, shape index: {}]
  %s3 = inlined_call_operand.hbm [shape: bf16[256,128], index: 3, kind: input, shape index: {}]
  %s4 = inlined_call_operand.vmem [shape: f32[1,128], index: 4, kind: input, shape index: {}]
  %s5 = inlined_call_operand.hbm [shape: f32[512,128], index: 5, kind: output, shape index: {}]
  %s6 = sld [smem:[#allocation0]]
  $region69: #{tpu_custom_call.1} parent=0
    _
  %s8 = ssub.s32 1, %s6
  %s9 = scalar_select 0, %s8, %s6
  $region1: #{tpu_custom_call.1} parent=0
    #allocation2 [shape = 'u8[262144]{0}', space=vmem, size = 0x40000, scoped, tag = 'input window, operand 0']
    #allocation3 [shape = 's32[2]{0}', space=sflag, size = 0x8, scoped, tag = 'scoped memory for tpu_custom_call.1']
    #allocation4 [shape = 's32[2]{0}', space=sflag, size = 0x8, scoped, tag = 'scoped memory for tpu_custom_call.1']
    #allocation5 [shape = 'u8[65536]{0}', space=vmem, size = 0x10000, scoped, tag = 'input window, operand 1, single buffered']
    #allocation6 [shape = 's32[1]{0}', space=sflag, size = 0x4, scoped, tag = 'scoped memory for tpu_custom_call.1']
    #allocation7 [shape = 'u8[1024]{0}', space=vmem, size = 0x400, scoped, tag = 'input window, operand 2, single buffered']
    #allocation8 [shape = 'u8[65536]{0}', space=vmem, size = 0x10000, scoped, tag = 'input window, operand 3, single buffered']
    #allocation9 [shape = 's32[1]{0}', space=sflag, size = 0x4, scoped, tag = 'scoped memory for tpu_custom_call.1']
    #allocation10 [shape = 'u8[262144]{0}', space=vmem, size = 0x40000, scoped, tag = 'output window, operand 0']
    %10 = vsyncpa [#allocation3], 0
    %s11 = scalar_lea.sflag [#allocation3], 1
    %12 = vsyncpa %s11, 0
    %13 = vsyncpa [#allocation6], 0
    %14 = vsyncpa [#allocation9], 0
    %15 = vsyncpa [#allocation4], 0
    %s16 = scalar_lea.sflag [#allocation4], 1
    %17 = vsyncpa %s16, 0
    loop: start=0, step=1, limit=4
    $region2: #{tpu_custom_call.1} parent=1 // loop_pre_header
      _
    $region3: #{tpu_custom_call.1} parent=1 // loop_header
      %s19 = sphi 0, %s23
      %p20 = scmp.ge.s32.totalorder %s19, 4
      %s29 = sphi 0, %s31
      %s32 = sphi 0, %s29
      %s33 = sphi 0, %s32
      %s49 = sphi 0, %s33
      %s53 = sphi 0, %s53
      %s55 = sphi 0, %s53
      %s56 = sphi 0, %s55
      %s70 = sphi 0, %s56
      %s74 = sphi 0, %s74
      %s76 = sphi 0, %s74
      %s77 = sphi 0, %s76
      %s91 = sphi 0, %s77
      %s95 = sphi 0, %s95
      %s97 = sphi 0, %s95
      %s98 = sphi 0, %s97
      %s112 = sphi 0, %s98
      %s116 = sphi 0, %s116
      %s118 = sphi 0, %s116
      %s119 = sphi 0, %s118
      %s133 = sphi 0, %s119
      %s139 = sphi 0, %s141
      %s142 = sphi 0, %s139
      %s143 = sphi 0, %s142
      %s159 = sphi 0, %s143
    $region4: #{tpu_custom_call.1} parent=1 // loop_header_branch
      %22 = sbr.rel (%p20) target = $region8
    $region5: #{tpu_custom_call.1} parent=1 // loop_body
      %s24 = ssub.s32 %s19, 1
      %s25 = ssub.s32 %s19, 2
      %s26 = sadd.s32 %s19, 1
      %s27 = ssub.s32 %s19, %s26
      %p28 = scmp.eq.s32.totalorder %s27, 0
      %s30 = sadd.s32 %s29, 1
      %s31 = scalar_select %p28, %s29, %s30
      %p34 = pneg %p28
      %p35 = scmp.eq.s32.totalorder %s19, 1
      %p36 = por %p34, %p35
      %p37 = scmp.ne.s32.totalorder %s29, %s32
      %p38 = scmp.eq.s32.totalorder %s19, 0
      %p39 = por %p37, %p38
      %p40 = scmp.ne.s32.totalorder %s29, %s32
      %p41 = scmp.eq.s32.totalorder %s24, 1
      %p42 = por %p40, %p41
      %p43 = scmp.ne.s32.totalorder %s32, %s33
      %p44 = scmp.eq.s32.totalorder %s24, 0
      %p45 = por %p43, %p44
      %p46 = scmp.ne.s32.totalorder %s32, %s33
      %p47 = scmp.eq.s32.totalorder %s25, 1
      %p48 = por %p46, %p47
      %p50 = scmp.ne.s32.totalorder %s33, %s49
      %p51 = scmp.eq.s32.totalorder %s25, 0
      %p52 = por %p50, %p51
      %s54 = sadd.s32 %s53, 1
      %p57 = scmp.eq.s32.totalorder %s19, 1
      %p58 = scmp.ne.s32.totalorder %s53, %s55
      %p59 = scmp.eq.s32.totalorder %s19, 0
      %p60 = por %p58, %p59
      %p61 = scmp.ne.s32.totalorder %s53, %s55
      %p62 = scmp.eq.s32.totalorder %s24, 1
      %p63 = por %p61, %p62
      %p64 = scmp.ne.s32.totalorder %s55, %s56
      %p65 = scmp.eq.s32.totalorder %s24, 0
      %p66 = por %p64, %p65
      %p67 = scmp.ne.s32.totalorder %s55, %s56
      %p68 = scmp.eq.s32.totalorder %s25, 1
      %p69 = por %p67, %p68
      %p71 = scmp.ne.s32.totalorder %s56, %s70
      %p72 = scmp.eq.s32.totalorder %s25, 0
      %p73 = por %p71, %p72
      %s75 = sadd.s32 %s74, 1
      %p78 = scmp.eq.s32.totalorder %s19, 1
      %p79 = scmp.ne.s32.totalorder %s74, %s76
      %p80 = scmp.eq.s32.totalorder %s19, 0
      %p81 = por %p79, %p80
      %p82 = scmp.ne.s32.totalorder %s74, %s76
      %p83 = scmp.eq.s32.totalorder %s24, 1
      %p84 = por %p82, %p83
      %p85 = scmp.ne.s32.totalorder %s76, %s77
      %p86 = scmp.eq.s32.totalorder %s24, 0
      %p87 = por %p85, %p86
      %p88 = scmp.ne.s32.totalorder %s76, %s77
      %p89 = scmp.eq.s32.totalorder %s25, 1
      %p90 = por %p88, %p89
      %p92 = scmp.ne.s32.totalorder %s77, %s91
      %p93 = scmp.eq.s32.totalorder %s25, 0
      %p94 = por %p92, %p93
      %s96 = sadd.s32 %s95, 1
      %p99 = scmp.eq.s32.totalorder %s19, 1
      %p100 = scmp.ne.s32.totalorder %s95, %s97
      %p101 = scmp.eq.s32.totalorder %s19, 0
      %p102 = por %p100, %p101
      %p103 = scmp.ne.s32.totalorder %s95, %s97
      %p104 = scmp.eq.s32.totalorder %s24, 1
      %p105 = por %p103, %p104
      %p106 = scmp.ne.s32.totalorder %s97, %s98
      %p107 = scmp.eq.s32.totalorder %s24, 0
      %p108 = por %p106, %p107
      %p109 = scmp.ne.s32.totalorder %s97, %s98
      %p110 = scmp.eq.s32.totalorder %s25, 1
      %p111 = por %p109, %p110
      %p113 = scmp.ne.s32.totalorder %s98, %s112
      %p114 = scmp.eq.s32.totalorder %s25, 0
      %p115 = por %p113, %p114
      %s117 = sadd.s32 %s116, 1
      %p120 = scmp.eq.s32.totalorder %s19, 1
      %p121 = scmp.ne.s32.totalorder %s116, %s118
      %p122 = scmp.eq.s32.totalorder %s19, 0
      %p123 = por %p121, %p122
      %p124 = scmp.ne.s32.totalorder %s116, %s118
      %p125 = scmp.eq.s32.totalorder %s24, 1
      %p126 = por %p124, %p125
      %p127 = scmp.ne.s32.totalorder %s118, %s119
      %p128 = scmp.eq.s32.totalorder %s24, 0
      %p129 = por %p127, %p128
      %p130 = scmp.ne.s32.totalorder %s118, %s119
      %p131 = scmp.eq.s32.totalorder %s25, 1
      %p132 = por %p130, %p131
      %p134 = scmp.ne.s32.totalorder %s119, %s133
      %p135 = scmp.eq.s32.totalorder %s25, 0
      %p136 = por %p134, %p135
      %s137 = ssub.s32 %s19, %s26
      %p138 = scmp.eq.s32.totalorder %s137, 0
      %s140 = sadd.s32 %s139, 1
      %s141 = scalar_select %p138, %s139, %s140
      %p144 = pneg %p138
      %p145 = scmp.eq.s32.totalorder %s19, 1
      %p146 = por %p144, %p145
      %p147 = scmp.ne.s32.totalorder %s139, %s142
      %p148 = scmp.eq.s32.totalorder %s19, 0
      %p149 = por %p147, %p148
      %p150 = scmp.ne.s32.totalorder %s139, %s142
      %p151 = scmp.eq.s32.totalorder %s24, 1
      %p152 = por %p150, %p151
      %p153 = scmp.ne.s32.totalorder %s142, %s143
      %p154 = scmp.eq.s32.totalorder %s24, 0
      %p155 = por %p153, %p154
      %p156 = scmp.ne.s32.totalorder %s142, %s143
      %p157 = scmp.eq.s32.totalorder %s25, 1
      %p158 = por %p156, %p157
      %p160 = scmp.ne.s32.totalorder %s143, %s159
      %p161 = scmp.eq.s32.totalorder %s25, 0
      %p162 = por %p160, %p161
      %p163 = scmp.le.s32.totalorder 1, %s19
      %p164 = scmp.lt.s32.totalorder %s19, 3
      %p165 = pnand %p163, %p164
      %p166 = pneg %p165
      // Predicated region
      $region9: #{tpu_custom_call.1} parent=5 // pred_check
        _
      $region10: #{tpu_custom_call.1} parent=5 // pred_check_branch
        %168 = sbr.rel (%p165) target = $region12
      $region11: #{tpu_custom_call.1} parent=5 // pred_region
        %s169 = ssub.s32 %s19, 1
        // Predicated region
        $region13: #{tpu_custom_call.1} parent=11 // pred_check
          %p170 = pneg %p66
        $region14: #{tpu_custom_call.1} parent=11 // pred_check_branch
          %172 = sbr.rel (%p170) target = $region16
        $region15: #{tpu_custom_call.1} parent=11 // pred_region
          %174 = vsyncadd [#allocation6], 0
          %s175 = sshll.u32 %s1, 4
          %s176 = int_to_ptr.hbm [resolvable:$true] %s175
          %s177 = sshll.u32 [#allocation5], 4
          %s178 = int_to_ptr.vmem [resolvable:$true] %s177
          %183 = dma.hbm_to_vmem [thread:$0]  %s176, 2048, %s178, [#allocation6], 128, 128, 8
        $region16: #{tpu_custom_call.1} parent=11 // pred_fallthru
          _
        // Predicated region
        $region17: #{tpu_custom_call.1} parent=11 // pred_check
          %p184 = pneg %p87
        $region18: #{tpu_custom_call.1} parent=11 // pred_check_branch
          %186 = sbr.rel (%p184) target = $region20
        $region19: #{tpu_custom_call.1} parent=11 // pred_region
          %188 = vsyncadd [#allocation6], 0
          %s190 = sshll.u32 %s2, 4
          %s191 = int_to_ptr.hbm [resolvable:$true] %s190
          %s192 = sshll.u32 [#allocation7], 4
          %s193 = int_to_ptr.vmem [resolvable:$true] %s192
          %195 = dma.hbm_to_vmem [thread:$0]  %s191, 32, %s193, [#allocation6]
        $region20: #{tpu_custom_call.1} parent=11 // pred_fallthru
          _
        // Predicated region
        $region21: #{tpu_custom_call.1} parent=11 // pred_check
          %p196 = pneg %p108
        $region22: #{tpu_custom_call.1} parent=11 // pred_check_branch
          %198 = sbr.rel (%p196) target = $region24
        $region23: #{tpu_custom_call.1} parent=11 // pred_region
          %200 = vsyncadd [#allocation9], 0
          %s201 = sshll.u32 %s3, 4
          %s202 = int_to_ptr.hbm [resolvable:$true] %s201
          %s203 = sshll.u32 [#allocation8], 4
          %s204 = int_to_ptr.vmem [resolvable:$true] %s203
          %209 = dma.hbm_to_vmem [thread:$0]  %s202, 2048, %s204, [#allocation9], 64, 64, 4
        $region24: #{tpu_custom_call.1} parent=11 // pred_fallthru
          _
        // Predicated region
        $region25: #{tpu_custom_call.1} parent=11 // pred_check
          %p210 = pneg %p129
        $region26: #{tpu_custom_call.1} parent=11 // pred_check_branch
          %212 = sbr.rel (%p210) target = $region28
        $region27: #{tpu_custom_call.1} parent=11 // pred_region
          _
        $region28: #{tpu_custom_call.1} parent=11 // pred_fallthru
          _
      $region12: #{tpu_custom_call.1} parent=5 // pred_fallthru
        _
      %p213 = scmp.lt.s32.totalorder %s19, 2
      // Predicated region
      $region29: #{tpu_custom_call.1} parent=5 // pred_check
        %p214 = pneg %p213
      $region30: #{tpu_custom_call.1} parent=5 // pred_check_branch
        %216 = sbr.rel (%p214) target = $region32
      $region31: #{tpu_custom_call.1} parent=5 // pred_region
        // Predicated region
        $region33: #{tpu_custom_call.1} parent=31 // pred_check
          %p217 = pneg %p39
        $region34: #{tpu_custom_call.1} parent=31 // pred_check_branch
          %219 = sbr.rel (%p217) target = $region36
        $region35: #{tpu_custom_call.1} parent=31 // pred_region
          %s220 = sand.u32 %s29, 1
          %s221 = scalar_lea.sflag [#allocation3], %s220
          %s222 = sand.u32 %s29, 1
          %s223 = smul.addr %s222, 256
          %s224 = scalar_lea.vmem [#allocation2], %s223
          %s225 = smul.u32 32, %s19
          %227 = vsyncadd %s221, 0
          %s228 = smul.addr %s225, 8
          %s229 = scalar_lea.hbm %s0, %s228
          %s230 = sshll.u32 %s229, 4
          %s231 = int_to_ptr.hbm [resolvable:$true] %s230
          %s232 = sshll.u32 %s224, 4
          %s233 = int_to_ptr.vmem [resolvable:$true] %s232
          %238 = dma.hbm_to_vmem [thread:$0]  %s231, 4096, %s233, %s221, 128, 128, 8
        $region36: #{tpu_custom_call.1} parent=31 // pred_fallthru
          _
      $region32: #{tpu_custom_call.1} parent=5 // pred_fallthru
        _
      %p239 = scmp.le.s32.totalorder 1, %s19
      %p240 = scmp.lt.s32.totalorder %s19, 3
      %p241 = pnand %p239, %p240
      %p242 = pneg %p241
      // Predicated region
      $region37: #{tpu_custom_call.1} parent=5 // pred_check
        _
      $region38: #{tpu_custom_call.1} parent=5 // pred_check_branch
        %244 = sbr.rel (%p241) target = $region40
      $region39: #{tpu_custom_call.1} parent=5 // pred_region
        %s245 = ssub.s32 %s19, 1
        %s246 = sand.u32 %s32, 1
        %s247 = scalar_lea.sflag [#allocation3], %s246
        %s248 = sand.u32 %s32, 1
        %s249 = smul.addr %s248, 256
        %s250 = scalar_lea.vmem [#allocation2], %s249
        // Predicated region
        $region41: #{tpu_custom_call.1} parent=39 // pred_check
          %p251 = pneg %p45
        $region42: #{tpu_custom_call.1} parent=39 // pred_check_branch
          %253 = sbr.rel (%p251) target = $region44
        $region43: #{tpu_custom_call.1} parent=39 // pred_region
          %255 = dma.done %s247, 4096
        $region44: #{tpu_custom_call.1} parent=39 // pred_fallthru
          _
        // Predicated region
        $region45: #{tpu_custom_call.1} parent=39 // pred_check
          %p256 = pneg %p66
        $region46: #{tpu_custom_call.1} parent=39 // pred_check_branch
          %258 = sbr.rel (%p256) target = $region48
        $region47: #{tpu_custom_call.1} parent=39 // pred_region
          %260 = dma.done [#allocation6], 2048
        $region48: #{tpu_custom_call.1} parent=39 // pred_fallthru
          _
        // Predicated region
        $region49: #{tpu_custom_call.1} parent=39 // pred_check
          %p261 = pneg %p87
        $region50: #{tpu_custom_call.1} parent=39 // pred_check_branch
          %263 = sbr.rel (%p261) target = $region52
        $region51: #{tpu_custom_call.1} parent=39 // pred_region
          %265 = dma.done [#allocation6], 32
        $region52: #{tpu_custom_call.1} parent=39 // pred_fallthru
          _
        // Predicated region
        $region53: #{tpu_custom_call.1} parent=39 // pred_check
          %p266 = pneg %p108
        $region54: #{tpu_custom_call.1} parent=39 // pred_check_branch
          %268 = sbr.rel (%p266) target = $region56
        $region55: #{tpu_custom_call.1} parent=39 // pred_region
          %270 = dma.done [#allocation9], 2048
        $region56: #{tpu_custom_call.1} parent=39 // pred_fallthru
          _
        %s271 = sand.u32 %s32, 1
        %s272 = scalar_lea.sflag [#allocation3], %s271
        %s273 = sand.u32 %s32, 1
        %s274 = smul.addr %s273, 256
        %s275 = scalar_lea.vmem [#allocation2], %s274
        %p276 = pneg %p45
        %p277 = pneg %p42
        %p278 = pneg %p66
        %p279 = pneg %p63
        %p280 = pneg %p87
        %p281 = pneg %p84
        %p282 = pneg %p108
        %p283 = pneg %p105
        %p284 = pneg %p129
        %p285 = pneg %p126
        %p286 = pneg %p155
        %p287 = pneg %p152
        %s288 = sand.u32 %s142, 1
        %s289 = scalar_lea.sflag [#allocation4], %s288
        %s290 = sand.u32 %s142, 1
        %s291 = smul.addr %s290, 256
        %s292 = scalar_lea.vmem [#allocation10], %s291
        %s293 = smul.u32 32, %s24
        %s294 = smul.u32 32, %s24
        %v295 = vld [vmem:[%s250] sm:$0xff]
        %v296 = vld [vmem:[%s250 + $0x8] sm:$0xff]
        %v297 = vld [vmem:[%s250 + $0x10] sm:$0xff]
        %v298 = vld [vmem:[%s250 + $0x18] sm:$0xff]
        %v299 = vld [vmem:[%s250 + $0x20] sm:$0xff]
        %v300 = vld [vmem:[%s250 + $0x28] sm:$0xff]
        %v301 = vld [vmem:[%s250 + $0x30] sm:$0xff]
        %v302 = vld [vmem:[%s250 + $0x38] sm:$0xff]
        %v303 = vld [vmem:[%s250 + $0x40] sm:$0xff]
        %v304 = vld [vmem:[%s250 + $0x48] sm:$0xff]
        %v305 = vld [vmem:[%s250 + $0x50] sm:$0xff]
        %v306 = vld [vmem:[%s250 + $0x58] sm:$0xff]
        %v307 = vld [vmem:[%s250 + $0x60] sm:$0xff]
        %v308 = vld [vmem:[%s250 + $0x68] sm:$0xff]
        %v309 = vld [vmem:[%s250 + $0x70] sm:$0xff]
        %v310 = vld [vmem:[%s250 + $0x78] sm:$0xff]
        %v311 = vld [vmem:[%s250 + $0x80] sm:$0xff]
        %v312 = vld [vmem:[%s250 + $0x88] sm:$0xff]
        %v313 = vld [vmem:[%s250 + $0x90] sm:$0xff]
        %v314 = vld [vmem:[%s250 + $0x98] sm:$0xff]
        %v315 = vld [vmem:[%s250 + $0xa0] sm:$0xff]
        %v316 = vld [vmem:[%s250 + $0xa8] sm:$0xff]
        %v317 = vld [vmem:[%s250 + $0xb0] sm:$0xff]
        %v318 = vld [vmem:[%s250 + $0xb8] sm:$0xff]
        %v319 = vld [vmem:[%s250 + $0xc0] sm:$0xff]
        %v320 = vld [vmem:[%s250 + $0xc8] sm:$0xff]
        %v321 = vld [vmem:[%s250 + $0xd0] sm:$0xff]
        %v322 = vld [vmem:[%s250 + $0xd8] sm:$0xff]
        %v323 = vld [vmem:[%s250 + $0xe0] sm:$0xff]
        %v324 = vld [vmem:[%s250 + $0xe8] sm:$0xff]
        %v325 = vld [vmem:[%s250 + $0xf0] sm:$0xff]
        %v326 = vld [vmem:[%s250 + $0xf8] sm:$0xff]
        %v327 = vpack.c.bf16 %v296, %v295
        %v328 = vpack.c.bf16 %v298, %v297
        %v329 = vpack.c.bf16 %v300, %v299
        %v330 = vpack.c.bf16 %v302, %v301
        %v331 = vpack.c.bf16 %v304, %v303
        %v332 = vpack.c.bf16 %v306, %v305
        %v333 = vpack.c.bf16 %v308, %v307
        %v334 = vpack.c.bf16 %v310, %v309
        %v335 = vpack.c.bf16 %v312, %v311
        %v336 = vpack.c.bf16 %v314, %v313
        %v337 = vpack.c.bf16 %v316, %v315
        %v338 = vpack.c.bf16 %v318, %v317
        %v339 = vpack.c.bf16 %v320, %v319
        %v340 = vpack.c.bf16 %v322, %v321
        %v341 = vpack.c.bf16 %v324, %v323
        %v342 = vpack.c.bf16 %v326, %v325
        %v343 = vld [vmem:[#allocation5] sm:$0xff]
        %v344 = vld [vmem:[#allocation5 + $0x8] sm:$0xff]
        %v345 = vld [vmem:[#allocation5 + $0x10] sm:$0xff]
        %v346 = vld [vmem:[#allocation5 + $0x18] sm:$0xff]
        %v347 = vld [vmem:[#allocation5 + $0x20] sm:$0xff]
        %v348 = vld [vmem:[#allocation5 + $0x28] sm:$0xff]
        %v349 = vld [vmem:[#allocation5 + $0x30] sm:$0xff]
        %v350 = vld [vmem:[#allocation5 + $0x38] sm:$0xff]
        %v351 = vld [vmem:[#allocation5 + $0x40] sm:$0xff]
        %v352 = vld [vmem:[#allocation5 + $0x48] sm:$0xff]
        %v353 = vld [vmem:[#allocation5 + $0x50] sm:$0xff]
        %v354 = vld [vmem:[#allocation5 + $0x58] sm:$0xff]
        %v355 = vld [vmem:[#allocation5 + $0x60] sm:$0xff]
        %v356 = vld [vmem:[#allocation5 + $0x68] sm:$0xff]
        %v357 = vld [vmem:[#allocation5 + $0x70] sm:$0xff]
        %v358 = vld [vmem:[#allocation5 + $0x78] sm:$0xff]
        %v359 = vld [vmem:[#allocation7] sm:$0x3]
        %v361 = vperm.slane %v359, 0
        %v362 = vperm.slane %v359, 1
        %v381 = vunpack.c.l.b16 %v343
        %v382 = vunpack.c.h.b16 %v343
        %v383 = vunpack.c.l.b16 %v344
        %v384 = vunpack.c.h.b16 %v344
        %v385 = vunpack.c.l.b16 %v345
        %v386 = vunpack.c.h.b16 %v345
        %v387 = vunpack.c.l.b16 %v346
        %v388 = vunpack.c.h.b16 %v346
        %v389 = vunpack.c.l.b16 %v347
        %v390 = vunpack.c.h.b16 %v347
        %v391 = vunpack.c.l.b16 %v348
        %v392 = vunpack.c.h.b16 %v348
        %v393 = vunpack.c.l.b16 %v349
        %v394 = vunpack.c.h.b16 %v349
        %v395 = vunpack.c.l.b16 %v350
        %v396 = vunpack.c.h.b16 %v350
        %v397 = vunpack.c.l.b16 %v351
        %v398 = vunpack.c.h.b16 %v351
        %v399 = vunpack.c.l.b16 %v352
        %v400 = vunpack.c.h.b16 %v352
        %v401 = vunpack.c.l.b16 %v353
        %v402 = vunpack.c.h.b16 %v353
        %v403 = vunpack.c.l.b16 %v354
        %v404 = vunpack.c.h.b16 %v354
        %v405 = vunpack.c.l.b16 %v355
        %v406 = vunpack.c.h.b16 %v355
        %v407 = vunpack.c.l.b16 %v356
        %v408 = vunpack.c.h.b16 %v356
        %v409 = vunpack.c.l.b16 %v357
        %v410 = vunpack.c.h.b16 %v357
        %v411 = vunpack.c.l.b16 %v358
        %v412 = vunpack.c.h.b16 %v358
        %v413 = vpack.c.b16 %v383, %v381
        %v414 = vpack.c.b16 %v384, %v382
        %v415 = vpack.c.b16 %v387, %v385
        %v416 = vpack.c.b16 %v388, %v386
        %v417 = vpack.c.b16 %v391, %v389
        %v418 = vpack.c.b16 %v392, %v390
        %v419 = vpack.c.b16 %v395, %v393
        %v420 = vpack.c.b16 %v396, %v394
        %v421 = vpack.c.b16 %v399, %v397
        %v422 = vpack.c.b16 %v400, %v398
        %v423 = vpack.c.b16 %v403, %v401
        %v424 = vpack.c.b16 %v404, %v402
        %v425 = vpack.c.b16 %v407, %v405
        %v426 = vpack.c.b16 %v408, %v406
        %v427 = vpack.c.b16 %v411, %v409
        %v428 = vpack.c.b16 %v412, %v410
        %445 = vmatpush.bf16.msra.mxu0 %v427
        %446 = vmatpush.bf16.msra.mxu0 %v425
        %447 = vmatpush.bf16.msra.mxu0 %v423
        %448 = vmatpush.bf16.msra.mxu0 %v421
        %449 = vmatpush.bf16.msra.mxu0 %v419
        %450 = vmatpush.bf16.msra.mxu0 %v417
        %451 = vmatpush.bf16.msra.mxu0 %v415
        %452 = vmatpush.bf16.msra.mxu0 %v413
        %453 = vmatmul.bf16.gmra.mxu0 %v327
        %v454 = vpop.f32.mrf.mxu0
        %v455 = vadd.f32 %v361, %v454
        %v456 = vpop.f32.mrf.mxu0
        %v457 = vadd.f32 %v361, %v456
        %458 = vmatmul.bf16.gmra.mxu0 %v328
        %v459 = vpop.f32.mrf.mxu0
        %v460 = vadd.f32 %v361, %v459
        %v461 = vpop.f32.mrf.mxu0
        %v462 = vadd.f32 %v361, %v461
        %463 = vmatmul.bf16.gmra.mxu0 %v329
        %v464 = vpop.f32.mrf.mxu0
        %v465 = vadd.f32 %v361, %v464
        %v466 = vpop.f32.mrf.mxu0
        %v467 = vadd.f32 %v361, %v466
        %468 = vmatmul.bf16.gmra.mxu0 %v330
        %v469 = vpop.f32.mrf.mxu0
        %v470 = vadd.f32 %v361, %v469
        %v471 = vpop.f32.mrf.mxu0
        %v472 = vadd.f32 %v361, %v471
        %473 = vmatmul.bf16.gmra.mxu0 %v331
        %v474 = vpop.f32.mrf.mxu0
        %v475 = vadd.f32 %v361, %v474
        %v476 = vpop.f32.mrf.mxu0
        %v477 = vadd.f32 %v361, %v476
        %478 = vmatmul.bf16.gmra.mxu0 %v332
        %v479 = vpop.f32.mrf.mxu0
        %v480 = vadd.f32 %v361, %v479
        %v481 = vpop.f32.mrf.mxu0
        %v482 = vadd.f32 %v361, %v481
        %483 = vmatmul.bf16.gmra.mxu0 %v333
        %v484 = vpop.f32.mrf.mxu0
        %v485 = vadd.f32 %v361, %v484
        %v486 = vpop.f32.mrf.mxu0
        %v487 = vadd.f32 %v361, %v486
        %488 = vmatmul.bf16.gmra.mxu0 %v334
        %v489 = vpop.f32.mrf.mxu0
        %v490 = vadd.f32 %v361, %v489
        %v491 = vpop.f32.mrf.mxu0
        %v492 = vadd.f32 %v361, %v491
        %493 = vmatmul.bf16.gmra.mxu0 %v335
        %v494 = vpop.f32.mrf.mxu0
        %v495 = vadd.f32 %v361, %v494
        %v496 = vpop.f32.mrf.mxu0
        %v497 = vadd.f32 %v361, %v496
        %498 = vmatmul.bf16.gmra.mxu0 %v336
        %v499 = vpop.f32.mrf.mxu0
        %v500 = vadd.f32 %v361, %v499
        %v501 = vpop.f32.mrf.mxu0
        %v502 = vadd.f32 %v361, %v501
        %503 = vmatmul.bf16.gmra.mxu0 %v337
        %v504 = vpop.f32.mrf.mxu0
        %v505 = vadd.f32 %v361, %v504
        %v506 = vpop.f32.mrf.mxu0
        %v507 = vadd.f32 %v361, %v506
        %508 = vmatmul.bf16.gmra.mxu0 %v338
        %v509 = vpop.f32.mrf.mxu0
        %v510 = vadd.f32 %v361, %v509
        %v511 = vpop.f32.mrf.mxu0
        %v512 = vadd.f32 %v361, %v511
        %513 = vmatmul.bf16.gmra.mxu0 %v339
        %v514 = vpop.f32.mrf.mxu0
        %v515 = vadd.f32 %v361, %v514
        %v516 = vpop.f32.mrf.mxu0
        %v517 = vadd.f32 %v361, %v516
        %518 = vmatmul.bf16.gmra.mxu0 %v340
        %v519 = vpop.f32.mrf.mxu0
        %v520 = vadd.f32 %v361, %v519
        %v521 = vpop.f32.mrf.mxu0
        %v522 = vadd.f32 %v361, %v521
        %523 = vmatmul.bf16.gmra.mxu0 %v341
        %v524 = vpop.f32.mrf.mxu0
        %v525 = vadd.f32 %v361, %v524
        %v526 = vpop.f32.mrf.mxu0
        %v527 = vadd.f32 %v361, %v526
        %528 = vmatmul.bf16.gmra.mxu0 %v342
        %v529 = vpop.f32.mrf.mxu0
        %v530 = vadd.f32 %v361, %v529
        %v531 = vpop.f32.mrf.mxu0
        %v532 = vadd.f32 %v361, %v531
        %533 = vdwg.mxu0
        %534 = vmatpush.bf16.msra.mxu0 %v428
        %535 = vmatpush.bf16.msra.mxu0 %v426
        %536 = vmatpush.bf16.msra.mxu0 %v424
        %537 = vmatpush.bf16.msra.mxu0 %v422
        %538 = vmatpush.bf16.msra.mxu0 %v420
        %539 = vmatpush.bf16.msra.mxu0 %v418
        %540 = vmatpush.bf16.msra.mxu0 %v416
        %541 = vmatpush.bf16.msra.mxu0 %v414
        %542 = vmatmul.bf16.gmra.mxu0 %v327
        %v543 = vpop.f32.mrf.mxu0
        %v544 = vadd.f32 %v362, %v543
        %v545 = vpop.f32.mrf.mxu0
        %v546 = vadd.f32 %v362, %v545
        %547 = vmatmul.bf16.gmra.mxu0 %v328
        %v548 = vpop.f32.mrf.mxu0
        %v549 = vadd.f32 %v362, %v548
        %v550 = vpop.f32.mrf.mxu0
        %v551 = vadd.f32 %v362, %v550
        %552 = vmatmul.bf16.gmra.mxu0 %v329
        %v553 = vpop.f32.mrf.mxu0
        %v554 = vadd.f32 %v362, %v553
        %v555 = vpop.f32.mrf.mxu0
        %v556 = vadd.f32 %v362, %v555
        %557 = vmatmul.bf16.gmra.mxu0 %v330
        %v558 = vpop.f32.mrf.mxu0
        %v559 = vadd.f32 %v362, %v558
        %v560 = vpop.f32.mrf.mxu0
        %v561 = vadd.f32 %v362, %v560
        %562 = vmatmul.bf16.gmra.mxu0 %v331
        %v563 = vpop.f32.mrf.mxu0
        %v564 = vadd.f32 %v362, %v563
        %v565 = vpop.f32.mrf.mxu0
        %v566 = vadd.f32 %v362, %v565
        %567 = vmatmul.bf16.gmra.mxu0 %v332
        %v568 = vpop.f32.mrf.mxu0
        %v569 = vadd.f32 %v362, %v568
        %v570 = vpop.f32.mrf.mxu0
        %v571 = vadd.f32 %v362, %v570
        %572 = vmatmul.bf16.gmra.mxu0 %v333
        %v573 = vpop.f32.mrf.mxu0
        %v574 = vadd.f32 %v362, %v573
        %v575 = vpop.f32.mrf.mxu0
        %v576 = vadd.f32 %v362, %v575
        %577 = vmatmul.bf16.gmra.mxu0 %v334
        %v578 = vpop.f32.mrf.mxu0
        %v579 = vadd.f32 %v362, %v578
        %v580 = vpop.f32.mrf.mxu0
        %v581 = vadd.f32 %v362, %v580
        %582 = vmatmul.bf16.gmra.mxu0 %v335
        %v583 = vpop.f32.mrf.mxu0
        %v584 = vadd.f32 %v362, %v583
        %v585 = vpop.f32.mrf.mxu0
        %v586 = vadd.f32 %v362, %v585
        %587 = vmatmul.bf16.gmra.mxu0 %v336
        %v588 = vpop.f32.mrf.mxu0
        %v589 = vadd.f32 %v362, %v588
        %v590 = vpop.f32.mrf.mxu0
        %v591 = vadd.f32 %v362, %v590
        %592 = vmatmul.bf16.gmra.mxu0 %v337
        %v593 = vpop.f32.mrf.mxu0
        %v594 = vadd.f32 %v362, %v593
        %v595 = vpop.f32.mrf.mxu0
        %v596 = vadd.f32 %v362, %v595
        %597 = vmatmul.bf16.gmra.mxu0 %v338
        %v598 = vpop.f32.mrf.mxu0
        %v599 = vadd.f32 %v362, %v598
        %v600 = vpop.f32.mrf.mxu0
        %v601 = vadd.f32 %v362, %v600
        %602 = vmatmul.bf16.gmra.mxu0 %v339
        %v603 = vpop.f32.mrf.mxu0
        %v604 = vadd.f32 %v362, %v603
        %v605 = vpop.f32.mrf.mxu0
        %v606 = vadd.f32 %v362, %v605
        %607 = vmatmul.bf16.gmra.mxu0 %v340
        %v608 = vpop.f32.mrf.mxu0
        %v609 = vadd.f32 %v362, %v608
        %v610 = vpop.f32.mrf.mxu0
        %v611 = vadd.f32 %v362, %v610
        %612 = vmatmul.bf16.gmra.mxu0 %v341
        %v613 = vpop.f32.mrf.mxu0
        %v614 = vadd.f32 %v362, %v613
        %v615 = vpop.f32.mrf.mxu0
        %v616 = vadd.f32 %v362, %v615
        %617 = vmatmul.bf16.gmra.mxu0 %v342
        %v618 = vpop.f32.mrf.mxu0
        %v619 = vadd.f32 %v362, %v618
        %v620 = vpop.f32.mrf.mxu0
        %v621 = vadd.f32 %v362, %v620
        %622 = vdwg.mxu0
        %v623 = vmul.f32 %v455, %v455
        %v624 = vmul.f32 %v544, %v544
        %v625 = vmul.f32 %v457, %v457
        %v626 = vmul.f32 %v546, %v546
        %v627 = vmul.f32 %v460, %v460
        %v628 = vmul.f32 %v549, %v549
        %v629 = vmul.f32 %v462, %v462
        %v630 = vmul.f32 %v551, %v551
        %v631 = vmul.f32 %v465, %v465
        %v632 = vmul.f32 %v554, %v554
        %v633 = vmul.f32 %v467, %v467
        %v634 = vmul.f32 %v556, %v556
        %v635 = vmul.f32 %v470, %v470
        %v636 = vmul.f32 %v559, %v559
        %v637 = vmul.f32 %v472, %v472
        %v638 = vmul.f32 %v561, %v561
        %v639 = vmul.f32 %v475, %v475
        %v640 = vmul.f32 %v564, %v564
        %v641 = vmul.f32 %v477, %v477
        %v642 = vmul.f32 %v566, %v566
        %v643 = vmul.f32 %v480, %v480
        %v644 = vmul.f32 %v569, %v569
        %v645 = vmul.f32 %v482, %v482
        %v646 = vmul.f32 %v571, %v571
        %v647 = vmul.f32 %v485, %v485
        %v648 = vmul.f32 %v574, %v574
        %v649 = vmul.f32 %v487, %v487
        %v650 = vmul.f32 %v576, %v576
        %v651 = vmul.f32 %v490, %v490
        %v652 = vmul.f32 %v579, %v579
        %v653 = vmul.f32 %v492, %v492
        %v654 = vmul.f32 %v581, %v581
        %v655 = vmul.f32 %v495, %v495
        %v656 = vmul.f32 %v584, %v584
        %v657 = vmul.f32 %v497, %v497
        %v658 = vmul.f32 %v586, %v586
        %v659 = vmul.f32 %v500, %v500
        %v660 = vmul.f32 %v589, %v589
        %v661 = vmul.f32 %v502, %v502
        %v662 = vmul.f32 %v591, %v591
        %v663 = vmul.f32 %v505, %v505
        %v664 = vmul.f32 %v594, %v594
        %v665 = vmul.f32 %v507, %v507
        %v666 = vmul.f32 %v596, %v596
        %v667 = vmul.f32 %v510, %v510
        %v668 = vmul.f32 %v599, %v599
        %v669 = vmul.f32 %v512, %v512
        %v670 = vmul.f32 %v601, %v601
        %v671 = vmul.f32 %v515, %v515
        %v672 = vmul.f32 %v604, %v604
        %v673 = vmul.f32 %v517, %v517
        %v674 = vmul.f32 %v606, %v606
        %v675 = vmul.f32 %v520, %v520
        %v676 = vmul.f32 %v609, %v609
        %v677 = vmul.f32 %v522, %v522
        %v678 = vmul.f32 %v611, %v611
        %v679 = vmul.f32 %v525, %v525
        %v680 = vmul.f32 %v614, %v614
        %v681 = vmul.f32 %v527, %v527
        %v682 = vmul.f32 %v616, %v616
        %v683 = vmul.f32 %v530, %v530
        %v684 = vmul.f32 %v619, %v619
        %v685 = vmul.f32 %v532, %v532
        %v686 = vmul.f32 %v621, %v621
        %v687 = vmul.f32 %v623, 0.035677407
        %v688 = vmul.f32 %v624, 0.035677407
        %v689 = vmul.f32 %v625, 0.035677407
        %v690 = vmul.f32 %v626, 0.035677407
        %v691 = vmul.f32 %v627, 0.035677407
        %v692 = vmul.f32 %v628, 0.035677407
        %v693 = vmul.f32 %v629, 0.035677407
        %v694 = vmul.f32 %v630, 0.035677407
        %v695 = vmul.f32 %v631, 0.035677407
        %v696 = vmul.f32 %v632, 0.035677407
        %v697 = vmul.f32 %v633, 0.035677407
        %v698 = vmul.f32 %v634, 0.035677407
        %v699 = vmul.f32 %v635, 0.035677407
        %v700 = vmul.f32 %v636, 0.035677407
        %v701 = vmul.f32 %v637, 0.035677407
        %v702 = vmul.f32 %v638, 0.035677407
        %v703 = vmul.f32 %v639, 0.035677407
        %v704 = vmul.f32 %v640, 0.035677407
        %v705 = vmul.f32 %v641, 0.035677407
        %v706 = vmul.f32 %v642, 0.035677407
        %v707 = vmul.f32 %v643, 0.035677407
        %v708 = vmul.f32 %v644, 0.035677407
        %v709 = vmul.f32 %v645, 0.035677407
        %v710 = vmul.f32 %v646, 0.035677407
        %v711 = vmul.f32 %v647, 0.035677407
        %v712 = vmul.f32 %v648, 0.035677407
        %v713 = vmul.f32 %v649, 0.035677407
        %v714 = vmul.f32 %v650, 0.035677407
        %v715 = vmul.f32 %v651, 0.035677407
        %v716 = vmul.f32 %v652, 0.035677407
        %v717 = vmul.f32 %v653, 0.035677407
        %v718 = vmul.f32 %v654, 0.035677407
        %v719 = vmul.f32 %v655, 0.035677407
        %v720 = vmul.f32 %v656, 0.035677407
        %v721 = vmul.f32 %v657, 0.035677407
        %v722 = vmul.f32 %v658, 0.035677407
        %v723 = vmul.f32 %v659, 0.035677407
        %v724 = vmul.f32 %v660, 0.035677407
        %v725 = vmul.f32 %v661, 0.035677407
        %v726 = vmul.f32 %v662, 0.035677407
        %v727 = vmul.f32 %v663, 0.035677407
        %v728 = vmul.f32 %v664, 0.035677407
        %v729 = vmul.f32 %v665, 0.035677407
        %v730 = vmul.f32 %v666, 0.035677407
        %v731 = vmul.f32 %v667, 0.035677407
        %v732 = vmul.f32 %v668, 0.035677407
        %v733 = vmul.f32 %v669, 0.035677407
        %v734 = vmul.f32 %v670, 0.035677407
        %v735 = vmul.f32 %v671, 0.035677407
        %v736 = vmul.f32 %v672, 0.035677407
        %v737 = vmul.f32 %v673, 0.035677407
        %v738 = vmul.f32 %v674, 0.035677407
        %v739 = vmul.f32 %v675, 0.035677407
        %v740 = vmul.f32 %v676, 0.035677407
        %v741 = vmul.f32 %v677, 0.035677407
        %v742 = vmul.f32 %v678, 0.035677407
        %v743 = vmul.f32 %v679, 0.035677407
        %v744 = vmul.f32 %v680, 0.035677407
        %v745 = vmul.f32 %v681, 0.035677407
        %v746 = vmul.f32 %v682, 0.035677407
        %v747 = vmul.f32 %v683, 0.035677407
        %v748 = vmul.f32 %v684, 0.035677407
        %v749 = vmul.f32 %v685, 0.035677407
        %v750 = vmul.f32 %v686, 0.035677407
        %v751 = vadd.f32 %v687, 0.7978846
        %v752 = vadd.f32 %v688, 0.7978846
        %v753 = vadd.f32 %v689, 0.7978846
        %v754 = vadd.f32 %v690, 0.7978846
        %v755 = vadd.f32 %v691, 0.7978846
        %v756 = vadd.f32 %v692, 0.7978846
        %v757 = vadd.f32 %v693, 0.7978846
        %v758 = vadd.f32 %v694, 0.7978846
        %v759 = vadd.f32 %v695, 0.7978846
        %v760 = vadd.f32 %v696, 0.7978846
        %v761 = vadd.f32 %v697, 0.7978846
        %v762 = vadd.f32 %v698, 0.7978846
        %v763 = vadd.f32 %v699, 0.7978846
        %v764 = vadd.f32 %v700, 0.7978846
        %v765 = vadd.f32 %v701, 0.7978846
        %v766 = vadd.f32 %v702, 0.7978846
        %v767 = vadd.f32 %v703, 0.7978846
        %v768 = vadd.f32 %v704, 0.7978846
        %v769 = vadd.f32 %v705, 0.7978846
        %v770 = vadd.f32 %v706, 0.7978846
        %v771 = vadd.f32 %v707, 0.7978846
        %v772 = vadd.f32 %v708, 0.7978846
        %v773 = vadd.f32 %v709, 0.7978846
        %v774 = vadd.f32 %v710, 0.7978846
        %v775 = vadd.f32 %v711, 0.7978846
        %v776 = vadd.f32 %v712, 0.7978846
        %v777 = vadd.f32 %v713, 0.7978846
        %v778 = vadd.f32 %v714, 0.7978846
        %v779 = vadd.f32 %v715, 0.7978846
        %v780 = vadd.f32 %v716, 0.7978846
        %v781 = vadd.f32 %v717, 0.7978846
        %v782 = vadd.f32 %v718, 0.7978846
        %v783 = vadd.f32 %v719, 0.7978846
        %v784 = vadd.f32 %v720, 0.7978846
        %v785 = vadd.f32 %v721, 0.7978846
        %v786 = vadd.f32 %v722, 0.7978846
        %v787 = vadd.f32 %v723, 0.7978846
        %v788 = vadd.f32 %v724, 0.7978846
        %v789 = vadd.f32 %v725, 0.7978846
        %v790 = vadd.f32 %v726, 0.7978846
        %v791 = vadd.f32 %v727, 0.7978846
        %v792 = vadd.f32 %v728, 0.7978846
        %v793 = vadd.f32 %v729, 0.7978846
        %v794 = vadd.f32 %v730, 0.7978846
        %v795 = vadd.f32 %v731, 0.7978846
        %v796 = vadd.f32 %v732, 0.7978846
        %v797 = vadd.f32 %v733, 0.7978846
        %v798 = vadd.f32 %v734, 0.7978846
        %v799 = vadd.f32 %v735, 0.7978846
        %v800 = vadd.f32 %v736, 0.7978846
        %v801 = vadd.f32 %v737, 0.7978846
        %v802 = vadd.f32 %v738, 0.7978846
        %v803 = vadd.f32 %v739, 0.7978846
        %v804 = vadd.f32 %v740, 0.7978846
        %v805 = vadd.f32 %v741, 0.7978846
        %v806 = vadd.f32 %v742, 0.7978846
        %v807 = vadd.f32 %v743, 0.7978846
        %v808 = vadd.f32 %v744, 0.7978846
        %v809 = vadd.f32 %v745, 0.7978846
        %v810 = vadd.f32 %v746, 0.7978846
        %v811 = vadd.f32 %v747, 0.7978846
        %v812 = vadd.f32 %v748, 0.7978846
        %v813 = vadd.f32 %v749, 0.7978846
        %v814 = vadd.f32 %v750, 0.7978846
        %v815 = vmul.f32 %v455, %v751
        %v816 = vmul.f32 %v544, %v752
        %v817 = vmul.f32 %v457, %v753
        %v818 = vmul.f32 %v546, %v754
        %v819 = vmul.f32 %v460, %v755
        %v820 = vmul.f32 %v549, %v756
        %v821 = vmul.f32 %v462, %v757
        %v822 = vmul.f32 %v551, %v758
        %v823 = vmul.f32 %v465, %v759
        %v824 = vmul.f32 %v554, %v760
        %v825 = vmul.f32 %v467, %v761
        %v826 = vmul.f32 %v556, %v762
        %v827 = vmul.f32 %v470, %v763
        %v828 = vmul.f32 %v559, %v764
        %v829 = vmul.f32 %v472, %v765
        %v830 = vmul.f32 %v561, %v766
        %v831 = vmul.f32 %v475, %v767
        %v832 = vmul.f32 %v564, %v768
        %v833 = vmul.f32 %v477, %v769
        %v834 = vmul.f32 %v566, %v770
        %v835 = vmul.f32 %v480, %v771
        %v836 = vmul.f32 %v569, %v772
        %v837 = vmul.f32 %v482, %v773
        %v838 = vmul.f32 %v571, %v774
        %v839 = vmul.f32 %v485, %v775
        %v840 = vmul.f32 %v574, %v776
        %v841 = vmul.f32 %v487, %v777
        %v842 = vmul.f32 %v576, %v778
        %v843 = vmul.f32 %v490, %v779
        %v844 = vmul.f32 %v579, %v780
        %v845 = vmul.f32 %v492, %v781
        %v846 = vmul.f32 %v581, %v782
        %v847 = vmul.f32 %v495, %v783
        %v848 = vmul.f32 %v584, %v784
        %v849 = vmul.f32 %v497, %v785
        %v850 = vmul.f32 %v586, %v786
        %v851 = vmul.f32 %v500, %v787
        %v852 = vmul.f32 %v589, %v788
        %v853 = vmul.f32 %v502, %v789
        %v854 = vmul.f32 %v591, %v790
        %v855 = vmul.f32 %v505, %v791
        %v856 = vmul.f32 %v594, %v792
        %v857 = vmul.f32 %v507, %v793
        %v858 = vmul.f32 %v596, %v794
        %v859 = vmul.f32 %v510, %v795
        %v860 = vmul.f32 %v599, %v796
        %v861 = vmul.f32 %v512, %v797
        %v862 = vmul.f32 %v601, %v798
        %v863 = vmul.f32 %v515, %v799
        %v864 = vmul.f32 %v604, %v800
        %v865 = vmul.f32 %v517, %v801
        %v866 = vmul.f32 %v606, %v802
        %v867 = vmul.f32 %v520, %v803
        %v868 = vmul.f32 %v609, %v804
        %v869 = vmul.f32 %v522, %v805
        %v870 = vmul.f32 %v611, %v806
        %v871 = vmul.f32 %v525, %v807
        %v872 = vmul.f32 %v614, %v808
        %v873 = vmul.f32 %v527, %v809
        %v874 = vmul.f32 %v616, %v810
        %v875 = vmul.f32 %v530, %v811
        %v876 = vmul.f32 %v619, %v812
        %v877 = vmul.f32 %v532, %v813
        %v878 = vmul.f32 %v621, %v814
        %v879 = vtanh.pop %v815
        %v880 = vtanh.pop %v816
        %v881 = vtanh.pop %v817
        %v882 = vtanh.pop %v818
        %v883 = vtanh.pop %v819
        %v884 = vtanh.pop %v820
        %v885 = vtanh.pop %v821
        %v886 = vtanh.pop %v822
        %v887 = vtanh.pop %v823
        %v888 = vtanh.pop %v824
        %v889 = vtanh.pop %v825
        %v890 = vtanh.pop %v826
        %v891 = vtanh.pop %v827
        %v892 = vtanh.pop %v828
        %v893 = vtanh.pop %v829
        %v894 = vtanh.pop %v830
        %v895 = vtanh.pop %v831
        %v896 = vtanh.pop %v832
        %v897 = vtanh.pop %v833
        %v898 = vtanh.pop %v834
        %v899 = vtanh.pop %v835
        %v900 = vtanh.pop %v836
        %v901 = vtanh.pop %v837
        %v902 = vtanh.pop %v838
        %v903 = vtanh.pop %v839
        %v904 = vtanh.pop %v840
        %v905 = vtanh.pop %v841
        %v906 = vtanh.pop %v842
        %v907 = vtanh.pop %v843
        %v908 = vtanh.pop %v844
        %v909 = vtanh.pop %v845
        %v910 = vtanh.pop %v846
        %v911 = vtanh.pop %v847
        %v912 = vtanh.pop %v848
        %v913 = vtanh.pop %v849
        %v914 = vtanh.pop %v850
        %v915 = vtanh.pop %v851
        %v916 = vtanh.pop %v852
        %v917 = vtanh.pop %v853
        %v918 = vtanh.pop %v854
        %v919 = vtanh.pop %v855
        %v920 = vtanh.pop %v856
        %v921 = vtanh.pop %v857
        %v922 = vtanh.pop %v858
        %v923 = vtanh.pop %v859
        %v924 = vtanh.pop %v860
        %v925 = vtanh.pop %v861
        %v926 = vtanh.pop %v862
        %v927 = vtanh.pop %v863
        %v928 = vtanh.pop %v864
        %v929 = vtanh.pop %v865
        %v930 = vtanh.pop %v866
        %v931 = vtanh.pop %v867
        %v932 = vtanh.pop %v868
        %v933 = vtanh.pop %v869
        %v934 = vtanh.pop %v870
        %v935 = vtanh.pop %v871
        %v936 = vtanh.pop %v872
        %v937 = vtanh.pop %v873
        %v938 = vtanh.pop %v874
        %v939 = vtanh.pop %v875
        %v940 = vtanh.pop %v876
        %v941 = vtanh.pop %v877
        %v942 = vtanh.pop %v878
        %v943 = vmul.f32 %v455, 0.5
        %v944 = vmul.f32 %v544, 0.5
        %v945 = vmul.f32 %v457, 0.5
        %v946 = vmul.f32 %v546, 0.5
        %v947 = vmul.f32 %v460, 0.5
        %v948 = vmul.f32 %v549, 0.5
        %v949 = vmul.f32 %v462, 0.5
        %v950 = vmul.f32 %v551, 0.5
        %v951 = vmul.f32 %v465, 0.5
        %v952 = vmul.f32 %v554, 0.5
        %v953 = vmul.f32 %v467, 0.5
        %v954 = vmul.f32 %v556, 0.5
        %v955 = vmul.f32 %v470, 0.5
        %v956 = vmul.f32 %v559, 0.5
        %v957 = vmul.f32 %v472, 0.5
        %v958 = vmul.f32 %v561, 0.5
        %v959 = vmul.f32 %v475, 0.5
        %v960 = vmul.f32 %v564, 0.5
        %v961 = vmul.f32 %v477, 0.5
        %v962 = vmul.f32 %v566, 0.5
        %v963 = vmul.f32 %v480, 0.5
        %v964 = vmul.f32 %v569, 0.5
        %v965 = vmul.f32 %v482, 0.5
        %v966 = vmul.f32 %v571, 0.5
        %v967 = vmul.f32 %v485, 0.5
        %v968 = vmul.f32 %v574, 0.5
        %v969 = vmul.f32 %v487, 0.5
        %v970 = vmul.f32 %v576, 0.5
        %v971 = vmul.f32 %v490, 0.5
        %v972 = vmul.f32 %v579, 0.5
        %v973 = vmul.f32 %v492, 0.5
        %v974 = vmul.f32 %v581, 0.5
        %v975 = vmul.f32 %v495, 0.5
        %v976 = vmul.f32 %v584, 0.5
        %v977 = vmul.f32 %v497, 0.5
        %v978 = vmul.f32 %v586, 0.5
        %v979 = vmul.f32 %v500, 0.5
        %v980 = vmul.f32 %v589, 0.5
        %v981 = vmul.f32 %v502, 0.5
        %v982 = vmul.f32 %v591, 0.5
        %v983 = vmul.f32 %v505, 0.5
        %v984 = vmul.f32 %v594, 0.5
        %v985 = vmul.f32 %v507, 0.5
        %v986 = vmul.f32 %v596, 0.5
        %v987 = vmul.f32 %v510, 0.5
        %v988 = vmul.f32 %v599, 0.5
        %v989 = vmul.f32 %v512, 0.5
        %v990 = vmul.f32 %v601, 0.5
        %v991 = vmul.f32 %v515, 0.5
        %v992 = vmul.f32 %v604, 0.5
        %v993 = vmul.f32 %v517, 0.5
        %v994 = vmul.f32 %v606, 0.5
        %v995 = vmul.f32 %v520, 0.5
        %v996 = vmul.f32 %v609, 0.5
        %v997 = vmul.f32 %v522, 0.5
        %v998 = vmul.f32 %v611, 0.5
        %v999 = vmul.f32 %v525, 0.5
        %v1000 = vmul.f32 %v614, 0.5
        %v1001 = vmul.f32 %v527, 0.5
        %v1002 = vmul.f32 %v616, 0.5
        %v1003 = vmul.f32 %v530, 0.5
        %v1004 = vmul.f32 %v619, 0.5
        %v1005 = vmul.f32 %v532, 0.5
        %v1006 = vmul.f32 %v621, 0.5
        %v1007 = vadd.f32 %v879, 1.0
        %v1008 = vadd.f32 %v880, 1.0
        %v1009 = vadd.f32 %v881, 1.0
        %v1010 = vadd.f32 %v882, 1.0
        %v1011 = vadd.f32 %v883, 1.0
        %v1012 = vadd.f32 %v884, 1.0
        %v1013 = vadd.f32 %v885, 1.0
        %v1014 = vadd.f32 %v886, 1.0
        %v1015 = vadd.f32 %v887, 1.0
        %v1016 = vadd.f32 %v888, 1.0
        %v1017 = vadd.f32 %v889, 1.0
        %v1018 = vadd.f32 %v890, 1.0
        %v1019 = vadd.f32 %v891, 1.0
        %v1020 = vadd.f32 %v892, 1.0
        %v1021 = vadd.f32 %v893, 1.0
        %v1022 = vadd.f32 %v894, 1.0
        %v1023 = vadd.f32 %v895, 1.0
        %v1024 = vadd.f32 %v896, 1.0
        %v1025 = vadd.f32 %v897, 1.0
        %v1026 = vadd.f32 %v898, 1.0
        %v1027 = vadd.f32 %v899, 1.0
        %v1028 = vadd.f32 %v900, 1.0
        %v1029 = vadd.f32 %v901, 1.0
        %v1030 = vadd.f32 %v902, 1.0
        %v1031 = vadd.f32 %v903, 1.0
        %v1032 = vadd.f32 %v904, 1.0
        %v1033 = vadd.f32 %v905, 1.0
        %v1034 = vadd.f32 %v906, 1.0
        %v1035 = vadd.f32 %v907, 1.0
        %v1036 = vadd.f32 %v908, 1.0
        %v1037 = vadd.f32 %v909, 1.0
        %v1038 = vadd.f32 %v910, 1.0
        %v1039 = vadd.f32 %v911, 1.0
        %v1040 = vadd.f32 %v912, 1.0
        %v1041 = vadd.f32 %v913, 1.0
        %v1042 = vadd.f32 %v914, 1.0
        %v1043 = vadd.f32 %v915, 1.0
        %v1044 = vadd.f32 %v916, 1.0
        %v1045 = vadd.f32 %v917, 1.0
        %v1046 = vadd.f32 %v918, 1.0
        %v1047 = vadd.f32 %v919, 1.0
        %v1048 = vadd.f32 %v920, 1.0
        %v1049 = vadd.f32 %v921, 1.0
        %v1050 = vadd.f32 %v922, 1.0
        %v1051 = vadd.f32 %v923, 1.0
        %v1052 = vadd.f32 %v924, 1.0
        %v1053 = vadd.f32 %v925, 1.0
        %v1054 = vadd.f32 %v926, 1.0
        %v1055 = vadd.f32 %v927, 1.0
        %v1056 = vadd.f32 %v928, 1.0
        %v1057 = vadd.f32 %v929, 1.0
        %v1058 = vadd.f32 %v930, 1.0
        %v1059 = vadd.f32 %v931, 1.0
        %v1060 = vadd.f32 %v932, 1.0
        %v1061 = vadd.f32 %v933, 1.0
        %v1062 = vadd.f32 %v934, 1.0
        %v1063 = vadd.f32 %v935, 1.0
        %v1064 = vadd.f32 %v936, 1.0
        %v1065 = vadd.f32 %v937, 1.0
        %v1066 = vadd.f32 %v938, 1.0
        %v1067 = vadd.f32 %v939, 1.0
        %v1068 = vadd.f32 %v940, 1.0
        %v1069 = vadd.f32 %v941, 1.0
        %v1070 = vadd.f32 %v942, 1.0
        %v1071 = vmul.f32 %v943, %v1007
        %v1072 = vmul.f32 %v944, %v1008
        %v1073 = vmul.f32 %v945, %v1009
        %v1074 = vmul.f32 %v946, %v1010
        %v1075 = vmul.f32 %v947, %v1011
        %v1076 = vmul.f32 %v948, %v1012
        %v1077 = vmul.f32 %v949, %v1013
        %v1078 = vmul.f32 %v950, %v1014
        %v1079 = vmul.f32 %v951, %v1015
        %v1080 = vmul.f32 %v952, %v1016
        %v1081 = vmul.f32 %v953, %v1017
        %v1082 = vmul.f32 %v954, %v1018
        %v1083 = vmul.f32 %v955, %v1019
        %v1084 = vmul.f32 %v956, %v1020
        %v1085 = vmul.f32 %v957, %v1021
        %v1086 = vmul.f32 %v958, %v1022
        %v1087 = vmul.f32 %v959, %v1023
        %v1088 = vmul.f32 %v960, %v1024
        %v1089 = vmul.f32 %v961, %v1025
        %v1090 = vmul.f32 %v962, %v1026
        %v1091 = vmul.f32 %v963, %v1027
        %v1092 = vmul.f32 %v964, %v1028
        %v1093 = vmul.f32 %v965, %v1029
        %v1094 = vmul.f32 %v966, %v1030
        %v1095 = vmul.f32 %v967, %v1031
        %v1096 = vmul.f32 %v968, %v1032
        %v1097 = vmul.f32 %v969, %v1033
        %v1098 = vmul.f32 %v970, %v1034
        %v1099 = vmul.f32 %v971, %v1035
        %v1100 = vmul.f32 %v972, %v1036
        %v1101 = vmul.f32 %v973, %v1037
        %v1102 = vmul.f32 %v974, %v1038
        %v1103 = vmul.f32 %v975, %v1039
        %v1104 = vmul.f32 %v976, %v1040
        %v1105 = vmul.f32 %v977, %v1041
        %v1106 = vmul.f32 %v978, %v1042
        %v1107 = vmul.f32 %v979, %v1043
        %v1108 = vmul.f32 %v980, %v1044
        %v1109 = vmul.f32 %v981, %v1045
        %v1110 = vmul.f32 %v982, %v1046
        %v1111 = vmul.f32 %v983, %v1047
        %v1112 = vmul.f32 %v984, %v1048
        %v1113 = vmul.f32 %v985, %v1049
        %v1114 = vmul.f32 %v986, %v1050
        %v1115 = vmul.f32 %v987, %v1051
        %v1116 = vmul.f32 %v988, %v1052
        %v1117 = vmul.f32 %v989, %v1053
        %v1118 = vmul.f32 %v990, %v1054
        %v1119 = vmul.f32 %v991, %v1055
        %v1120 = vmul.f32 %v992, %v1056
        %v1121 = vmul.f32 %v993, %v1057
        %v1122 = vmul.f32 %v994, %v1058
        %v1123 = vmul.f32 %v995, %v1059
        %v1124 = vmul.f32 %v996, %v1060
        %v1125 = vmul.f32 %v997, %v1061
        %v1126 = vmul.f32 %v998, %v1062
        %v1127 = vmul.f32 %v999, %v1063
        %v1128 = vmul.f32 %v1000, %v1064
        %v1129 = vmul.f32 %v1001, %v1065
        %v1130 = vmul.f32 %v1002, %v1066
        %v1131 = vmul.f32 %v1003, %v1067
        %v1132 = vmul.f32 %v1004, %v1068
        %v1133 = vmul.f32 %v1005, %v1069
        %v1134 = vmul.f32 %v1006, %v1070
        %v1135 = vpack.c.bf16 %v1073, %v1071
        %v1136 = vpack.c.bf16 %v1074, %v1072
        %v1137 = vpack.c.bf16 %v1077, %v1075
        %v1138 = vpack.c.bf16 %v1078, %v1076
        %v1139 = vpack.c.bf16 %v1081, %v1079
        %v1140 = vpack.c.bf16 %v1082, %v1080
        %v1141 = vpack.c.bf16 %v1085, %v1083
        %v1142 = vpack.c.bf16 %v1086, %v1084
        %v1143 = vpack.c.bf16 %v1089, %v1087
        %v1144 = vpack.c.bf16 %v1090, %v1088
        %v1145 = vpack.c.bf16 %v1093, %v1091
        %v1146 = vpack.c.bf16 %v1094, %v1092
        %v1147 = vpack.c.bf16 %v1097, %v1095
        %v1148 = vpack.c.bf16 %v1098, %v1096
        %v1149 = vpack.c.bf16 %v1101, %v1099
        %v1150 = vpack.c.bf16 %v1102, %v1100
        %v1151 = vpack.c.bf16 %v1105, %v1103
        %v1152 = vpack.c.bf16 %v1106, %v1104
        %v1153 = vpack.c.bf16 %v1109, %v1107
        %v1154 = vpack.c.bf16 %v1110, %v1108
        %v1155 = vpack.c.bf16 %v1113, %v1111
        %v1156 = vpack.c.bf16 %v1114, %v1112
        %v1157 = vpack.c.bf16 %v1117, %v1115
        %v1158 = vpack.c.bf16 %v1118, %v1116
        %v1159 = vpack.c.bf16 %v1121, %v1119
        %v1160 = vpack.c.bf16 %v1122, %v1120
        %v1161 = vpack.c.bf16 %v1125, %v1123
        %v1162 = vpack.c.bf16 %v1126, %v1124
        %v1163 = vpack.c.bf16 %v1129, %v1127
        %v1164 = vpack.c.bf16 %v1130, %v1128
        %v1165 = vpack.c.bf16 %v1133, %v1131
        %v1166 = vpack.c.bf16 %v1134, %v1132
        %v1167 = vld [vmem:[#allocation8] sm:$0xf]
        %v1168 = vld [vmem:[#allocation8 + $0x4] sm:$0xf]
        %v1169 = vld [vmem:[#allocation8 + $0x8] sm:$0xf]
        %v1170 = vld [vmem:[#allocation8 + $0xc] sm:$0xf]
        %v1171 = vld [vmem:[#allocation8 + $0x10] sm:$0xf]
        %v1172 = vld [vmem:[#allocation8 + $0x14] sm:$0xf]
        %v1173 = vld [vmem:[#allocation8 + $0x18] sm:$0xf]
        %v1174 = vld [vmem:[#allocation8 + $0x1c] sm:$0xf]
        %v1175 = vld [vmem:[#allocation8 + $0x20] sm:$0xf]
        %v1176 = vld [vmem:[#allocation8 + $0x24] sm:$0xf]
        %v1177 = vld [vmem:[#allocation8 + $0x28] sm:$0xf]
        %v1178 = vld [vmem:[#allocation8 + $0x2c] sm:$0xf]
        %v1179 = vld [vmem:[#allocation8 + $0x30] sm:$0xf]
        %v1180 = vld [vmem:[#allocation8 + $0x34] sm:$0xf]
        %v1181 = vld [vmem:[#allocation8 + $0x38] sm:$0xf]
        %v1182 = vld [vmem:[#allocation8 + $0x3c] sm:$0xf]
        %v1183 = vld [vmem:[#allocation8 + $0x40] sm:$0xf]
        %v1184 = vld [vmem:[#allocation8 + $0x44] sm:$0xf]
        %v1185 = vld [vmem:[#allocation8 + $0x48] sm:$0xf]
        %v1186 = vld [vmem:[#allocation8 + $0x4c] sm:$0xf]
        %v1187 = vld [vmem:[#allocation8 + $0x50] sm:$0xf]
        %v1188 = vld [vmem:[#allocation8 + $0x54] sm:$0xf]
        %v1189 = vld [vmem:[#allocation8 + $0x58] sm:$0xf]
        %v1190 = vld [vmem:[#allocation8 + $0x5c] sm:$0xf]
        %v1191 = vld [vmem:[#allocation8 + $0x60] sm:$0xf]
        %v1192 = vld [vmem:[#allocation8 + $0x64] sm:$0xf]
        %v1193 = vld [vmem:[#allocation8 + $0x68] sm:$0xf]
        %v1194 = vld [vmem:[#allocation8 + $0x6c] sm:$0xf]
        %v1195 = vld [vmem:[#allocation8 + $0x70] sm:$0xf]
        %v1196 = vld [vmem:[#allocation8 + $0x74] sm:$0xf]
        %v1197 = vld [vmem:[#allocation8 + $0x78] sm:$0xf]
        %v1198 = vld [vmem:[#allocation8 + $0x7c] sm:$0xf]
        %v1199 = vld [vmem:[%s4] sm:$0x1]
        %v1201 = vperm.slane %v1199, 0
        %v1235 = vunpack.c.l.b16 %v1167
        %v1236 = vunpack.c.l.b16 %v1168
        %v1237 = vunpack.c.l.b16 %v1169
        %v1238 = vunpack.c.l.b16 %v1170
        %v1239 = vunpack.c.l.b16 %v1171
        %v1240 = vunpack.c.l.b16 %v1172
        %v1241 = vunpack.c.l.b16 %v1173
        %v1242 = vunpack.c.l.b16 %v1174
        %v1243 = vunpack.c.l.b16 %v1175
        %v1244 = vunpack.c.l.b16 %v1176
        %v1245 = vunpack.c.l.b16 %v1177
        %v1246 = vunpack.c.l.b16 %v1178
        %v1247 = vunpack.c.l.b16 %v1179
        %v1248 = vunpack.c.l.b16 %v1180
        %v1249 = vunpack.c.l.b16 %v1181
        %v1250 = vunpack.c.l.b16 %v1182
        %v1251 = vunpack.c.l.b16 %v1183
        %v1252 = vunpack.c.l.b16 %v1184
        %v1253 = vunpack.c.l.b16 %v1185
        %v1254 = vunpack.c.l.b16 %v1186
        %v1255 = vunpack.c.l.b16 %v1187
        %v1256 = vunpack.c.l.b16 %v1188
        %v1257 = vunpack.c.l.b16 %v1189
        %v1258 = vunpack.c.l.b16 %v1190
        %v1259 = vunpack.c.l.b16 %v1191
        %v1260 = vunpack.c.l.b16 %v1192
        %v1261 = vunpack.c.l.b16 %v1193
        %v1262 = vunpack.c.l.b16 %v1194
        %v1263 = vunpack.c.l.b16 %v1195
        %v1264 = vunpack.c.l.b16 %v1196
        %v1265 = vunpack.c.l.b16 %v1197
        %v1266 = vunpack.c.l.b16 %v1198
        %v1267 = vpack.c.b16 %v1236, %v1235
        %v1268 = vpack.c.b16 %v1238, %v1237
        %v1269 = vpack.c.b16 %v1240, %v1239
        %v1270 = vpack.c.b16 %v1242, %v1241
        %v1271 = vpack.c.b16 %v1244, %v1243
        %v1272 = vpack.c.b16 %v1246, %v1245
        %v1273 = vpack.c.b16 %v1248, %v1247
        %v1274 = vpack.c.b16 %v1250, %v1249
        %v1275 = vpack.c.b16 %v1252, %v1251
        %v1276 = vpack.c.b16 %v1254, %v1253
        %v1277 = vpack.c.b16 %v1256, %v1255
        %v1278 = vpack.c.b16 %v1258, %v1257
        %v1279 = vpack.c.b16 %v1260, %v1259
        %v1280 = vpack.c.b16 %v1262, %v1261
        %v1281 = vpack.c.b16 %v1264, %v1263
        %v1282 = vpack.c.b16 %v1266, %v1265
        %1299 = vmatpush.bf16.msra.mxu0 %v1274
        %1300 = vmatpush.bf16.msra.mxu0 %v1273
        %1301 = vmatpush.bf16.msra.mxu0 %v1272
        %1302 = vmatpush.bf16.msra.mxu0 %v1271
        %1303 = vmatpush.bf16.msra.mxu0 %v1270
        %1304 = vmatpush.bf16.msra.mxu0 %v1269
        %1305 = vmatpush.bf16.msra.mxu0 %v1268
        %1306 = vmatpush.bf16.msra.mxu0 %v1267
        %1307 = vmatmul.bf16.gmra.mxu0 %v1135
        %v1308 = vpop.f32.mrf.mxu0
        %v1309 = vadd.f32 %v1201, %v1308
        %v1310 = vpop.f32.mrf.mxu0
        %v1311 = vadd.f32 %v1201, %v1310
        %1312 = vmatmul.bf16.gmra.mxu0 %v1137
        %v1313 = vpop.f32.mrf.mxu0
        %v1314 = vadd.f32 %v1201, %v1313
        %v1315 = vpop.f32.mrf.mxu0
        %v1316 = vadd.f32 %v1201, %v1315
        %1317 = vmatmul.bf16.gmra.mxu0 %v1139
        %v1318 = vpop.f32.mrf.mxu0
        %v1319 = vadd.f32 %v1201, %v1318
        %v1320 = vpop.f32.mrf.mxu0
        %v1321 = vadd.f32 %v1201, %v1320
        %1322 = vmatmul.bf16.gmra.mxu0 %v1141
        %v1323 = vpop.f32.mrf.mxu0
        %v1324 = vadd.f32 %v1201, %v1323
        %v1325 = vpop.f32.mrf.mxu0
        %v1326 = vadd.f32 %v1201, %v1325
        %1327 = vmatmul.bf16.gmra.mxu0 %v1143
        %v1328 = vpop.f32.mrf.mxu0
        %v1329 = vadd.f32 %v1201, %v1328
        %v1330 = vpop.f32.mrf.mxu0
        %v1331 = vadd.f32 %v1201, %v1330
        %1332 = vmatmul.bf16.gmra.mxu0 %v1145
        %v1333 = vpop.f32.mrf.mxu0
        %v1334 = vadd.f32 %v1201, %v1333
        %v1335 = vpop.f32.mrf.mxu0
        %v1336 = vadd.f32 %v1201, %v1335
        %1337 = vmatmul.bf16.gmra.mxu0 %v1147
        %v1338 = vpop.f32.mrf.mxu0
        %v1339 = vadd.f32 %v1201, %v1338
        %v1340 = vpop.f32.mrf.mxu0
        %v1341 = vadd.f32 %v1201, %v1340
        %1342 = vmatmul.bf16.gmra.mxu0 %v1149
        %v1343 = vpop.f32.mrf.mxu0
        %v1344 = vadd.f32 %v1201, %v1343
        %v1345 = vpop.f32.mrf.mxu0
        %v1346 = vadd.f32 %v1201, %v1345
        %1347 = vmatmul.bf16.gmra.mxu0 %v1151
        %v1348 = vpop.f32.mrf.mxu0
        %v1349 = vadd.f32 %v1201, %v1348
        %v1350 = vpop.f32.mrf.mxu0
        %v1351 = vadd.f32 %v1201, %v1350
        %1352 = vmatmul.bf16.gmra.mxu0 %v1153
        %v1353 = vpop.f32.mrf.mxu0
        %v1354 = vadd.f32 %v1201, %v1353
        %v1355 = vpop.f32.mrf.mxu0
        %v1356 = vadd.f32 %v1201, %v1355
        %1357 = vmatmul.bf16.gmra.mxu0 %v1155
        %v1358 = vpop.f32.mrf.mxu0
        %v1359 = vadd.f32 %v1201, %v1358
        %v1360 = vpop.f32.mrf.mxu0
        %v1361 = vadd.f32 %v1201, %v1360
        %1362 = vmatmul.bf16.gmra.mxu0 %v1157
        %v1363 = vpop.f32.mrf.mxu0
        %v1364 = vadd.f32 %v1201, %v1363
        %v1365 = vpop.f32.mrf.mxu0
        %v1366 = vadd.f32 %v1201, %v1365
        %1367 = vmatmul.bf16.gmra.mxu0 %v1159
        %v1368 = vpop.f32.mrf.mxu0
        %v1369 = vadd.f32 %v1201, %v1368
        %v1370 = vpop.f32.mrf.mxu0
        %v1371 = vadd.f32 %v1201, %v1370
        %1372 = vmatmul.bf16.gmra.mxu0 %v1161
        %v1373 = vpop.f32.mrf.mxu0
        %v1374 = vadd.f32 %v1201, %v1373
        %v1375 = vpop.f32.mrf.mxu0
        %v1376 = vadd.f32 %v1201, %v1375
        %1377 = vmatmul.bf16.gmra.mxu0 %v1163
        %v1378 = vpop.f32.mrf.mxu0
        %v1379 = vadd.f32 %v1201, %v1378
        %v1380 = vpop.f32.mrf.mxu0
        %v1381 = vadd.f32 %v1201, %v1380
        %1382 = vmatmul.bf16.gmra.mxu0 %v1165
        %v1383 = vpop.f32.mrf.mxu0
        %v1384 = vadd.f32 %v1201, %v1383
        %v1385 = vpop.f32.mrf.mxu0
        %v1386 = vadd.f32 %v1201, %v1385
        %1387 = vdwg.mxu0
        %1388 = vmatpush.bf16.msra.mxu0 %v1282
        %1389 = vmatpush.bf16.msra.mxu0 %v1281
        %1390 = vmatpush.bf16.msra.mxu0 %v1280
        %1391 = vmatpush.bf16.msra.mxu0 %v1279
        %1392 = vmatpush.bf16.msra.mxu0 %v1278
        %1393 = vmatpush.bf16.msra.mxu0 %v1277
        %1394 = vmatpush.bf16.msra.mxu0 %v1276
        %1395 = vmatpush.bf16.msra.mxu0 %v1275
        %1396 = vmatmul.bf16.gmra.mxu0 %v1136
        %v1397 = vpop.f32.mrf.mxu0
        %v1398 = vadd.f32 %v1309, %v1397
        %v1399 = vpop.f32.mrf.mxu0
        %v1400 = vadd.f32 %v1311, %v1399
        %1401 = vmatmul.bf16.gmra.mxu0 %v1138
        %v1402 = vpop.f32.mrf.mxu0
        %v1403 = vadd.f32 %v1314, %v1402
        %v1404 = vpop.f32.mrf.mxu0
        %v1405 = vadd.f32 %v1316, %v1404
        %1406 = vmatmul.bf16.gmra.mxu0 %v1140
        %v1407 = vpop.f32.mrf.mxu0
        %v1408 = vadd.f32 %v1319, %v1407
        %v1409 = vpop.f32.mrf.mxu0
        %v1410 = vadd.f32 %v1321, %v1409
        %1411 = vmatmul.bf16.gmra.mxu0 %v1142
        %v1412 = vpop.f32.mrf.mxu0
        %v1413 = vadd.f32 %v1324, %v1412
        %v1414 = vpop.f32.mrf.mxu0
        %v1415 = vadd.f32 %v1326, %v1414
        %1416 = vmatmul.bf16.gmra.mxu0 %v1144
        %v1417 = vpop.f32.mrf.mxu0
        %v1418 = vadd.f32 %v1329, %v1417
        %v1419 = vpop.f32.mrf.mxu0
        %v1420 = vadd.f32 %v1331, %v1419
        %1421 = vmatmul.bf16.gmra.mxu0 %v1146
        %v1422 = vpop.f32.mrf.mxu0
        %v1423 = vadd.f32 %v1334, %v1422
        %v1424 = vpop.f32.mrf.mxu0
        %v1425 = vadd.f32 %v1336, %v1424
        %1426 = vmatmul.bf16.gmra.mxu0 %v1148
        %v1427 = vpop.f32.mrf.mxu0
        %v1428 = vadd.f32 %v1339, %v1427
        %v1429 = vpop.f32.mrf.mxu0
        %v1430 = vadd.f32 %v1341, %v1429
        %1431 = vmatmul.bf16.gmra.mxu0 %v1150
        %v1432 = vpop.f32.mrf.mxu0
        %v1433 = vadd.f32 %v1344, %v1432
        %v1434 = vpop.f32.mrf.mxu0
        %v1435 = vadd.f32 %v1346, %v1434
        %1436 = vmatmul.bf16.gmra.mxu0 %v1152
        %v1437 = vpop.f32.mrf.mxu0
        %v1438 = vadd.f32 %v1349, %v1437
        %v1439 = vpop.f32.mrf.mxu0
        %v1440 = vadd.f32 %v1351, %v1439
        %1441 = vmatmul.bf16.gmra.mxu0 %v1154
        %v1442 = vpop.f32.mrf.mxu0
        %v1443 = vadd.f32 %v1354, %v1442
        %v1444 = vpop.f32.mrf.mxu0
        %v1445 = vadd.f32 %v1356, %v1444
        %1446 = vmatmul.bf16.gmra.mxu0 %v1156
        %v1447 = vpop.f32.mrf.mxu0
        %v1448 = vadd.f32 %v1359, %v1447
        %v1449 = vpop.f32.mrf.mxu0
        %v1450 = vadd.f32 %v1361, %v1449
        %1451 = vmatmul.bf16.gmra.mxu0 %v1158
        %v1452 = vpop.f32.mrf.mxu0
        %v1453 = vadd.f32 %v1364, %v1452
        %v1454 = vpop.f32.mrf.mxu0
        %v1455 = vadd.f32 %v1366, %v1454
        %1456 = vmatmul.bf16.gmra.mxu0 %v1160
        %v1457 = vpop.f32.mrf.mxu0
        %v1458 = vadd.f32 %v1369, %v1457
        %v1459 = vpop.f32.mrf.mxu0
        %v1460 = vadd.f32 %v1371, %v1459
        %1461 = vmatmul.bf16.gmra.mxu0 %v1162
        %v1462 = vpop.f32.mrf.mxu0
        %v1463 = vadd.f32 %v1374, %v1462
        %v1464 = vpop.f32.mrf.mxu0
        %v1465 = vadd.f32 %v1376, %v1464
        %1466 = vmatmul.bf16.gmra.mxu0 %v1164
        %v1467 = vpop.f32.mrf.mxu0
        %v1468 = vadd.f32 %v1379, %v1467
        %v1469 = vpop.f32.mrf.mxu0
        %v1470 = vadd.f32 %v1381, %v1469
        %1471 = vmatmul.bf16.gmra.mxu0 %v1166
        %v1472 = vpop.f32.mrf.mxu0
        %v1473 = vadd.f32 %v1384, %v1472
        %v1474 = vpop.f32.mrf.mxu0
        %v1475 = vadd.f32 %v1386, %v1474
        %1476 = vdwg.mxu0
        %1477 = vst [vmem:[%s292] sm:$0xff] %v1398
        %1478 = vst [vmem:[%s292 + $0x8] sm:$0xff] %v1400
        %1479 = vst [vmem:[%s292 + $0x10] sm:$0xff] %v1403
        %1480 = vst [vmem:[%s292 + $0x18] sm:$0xff] %v1405
        %1481 = vst [vmem:[%s292 + $0x20] sm:$0xff] %v1408
        %1482 = vst [vmem:[%s292 + $0x28] sm:$0xff] %v1410
        %1483 = vst [vmem:[%s292 + $0x30] sm:$0xff] %v1413
        %1484 = vst [vmem:[%s292 + $0x38] sm:$0xff] %v1415
        %1485 = vst [vmem:[%s292 + $0x40] sm:$0xff] %v1418
        %1486 = vst [vmem:[%s292 + $0x48] sm:$0xff] %v1420
        %1487 = vst [vmem:[%s292 + $0x50] sm:$0xff] %v1423
        %1488 = vst [vmem:[%s292 + $0x58] sm:$0xff] %v1425
        %1489 = vst [vmem:[%s292 + $0x60] sm:$0xff] %v1428
        %1490 = vst [vmem:[%s292 + $0x68] sm:$0xff] %v1430
        %1491 = vst [vmem:[%s292 + $0x70] sm:$0xff] %v1433
        %1492 = vst [vmem:[%s292 + $0x78] sm:$0xff] %v1435
        %1493 = vst [vmem:[%s292 + $0x80] sm:$0xff] %v1438
        %1494 = vst [vmem:[%s292 + $0x88] sm:$0xff] %v1440
        %1495 = vst [vmem:[%s292 + $0x90] sm:$0xff] %v1443
        %1496 = vst [vmem:[%s292 + $0x98] sm:$0xff] %v1445
        %1497 = vst [vmem:[%s292 + $0xa0] sm:$0xff] %v1448
        %1498 = vst [vmem:[%s292 + $0xa8] sm:$0xff] %v1450
        %1499 = vst [vmem:[%s292 + $0xb0] sm:$0xff] %v1453
        %1500 = vst [vmem:[%s292 + $0xb8] sm:$0xff] %v1455
        %1501 = vst [vmem:[%s292 + $0xc0] sm:$0xff] %v1458
        %1502 = vst [vmem:[%s292 + $0xc8] sm:$0xff] %v1460
        %1503 = vst [vmem:[%s292 + $0xd0] sm:$0xff] %v1463
        %1504 = vst [vmem:[%s292 + $0xd8] sm:$0xff] %v1465
        %1505 = vst [vmem:[%s292 + $0xe0] sm:$0xff] %v1468
        %1506 = vst [vmem:[%s292 + $0xe8] sm:$0xff] %v1470
        %1507 = vst [vmem:[%s292 + $0xf0] sm:$0xff] %v1473
        %1508 = vst [vmem:[%s292 + $0xf8] sm:$0xff] %v1475
        %s1509 = sand.u32 %s142, 1
        %s1510 = scalar_lea.sflag [#allocation4], %s1509
        %s1511 = sand.u32 %s142, 1
        %s1512 = smul.addr %s1511, 256
        %s1513 = scalar_lea.vmem [#allocation10], %s1512
        // Predicated region
        $region57: #{tpu_custom_call.1} parent=39 // pred_check
          %p1514 = pneg %p152
        $region58: #{tpu_custom_call.1} parent=39 // pred_check_branch
          %1516 = sbr.rel (%p1514) target = $region60
        $region59: #{tpu_custom_call.1} parent=39 // pred_region
          %s1517 = smul.u32 32, %s24
          %1519 = vsyncadd %s1510, 0
          %s1520 = smul.addr %s1517, 8
          %s1521 = scalar_lea.hbm %s5, %s1520
          %s1522 = sshll.u32 %s1513, 4
          %s1523 = int_to_ptr.vmem [resolvable:$true] %s1522
          %s1524 = sshll.u32 %s1521, 4
          %s1525 = int_to_ptr.hbm [resolvable:$true] %s1524
          %1530 = dma.vmem_to_hbm [thread:$0]  %s1523, 4096, %s1525, %s1510, 128, 128, 8
        $region60: #{tpu_custom_call.1} parent=39 // pred_fallthru
          _
      $region40: #{tpu_custom_call.1} parent=5 // pred_fallthru
        _
      %p1531 = scmp.le.s32.totalorder 2, %s19
      // Predicated region
      $region61: #{tpu_custom_call.1} parent=5 // pred_check
        %p1532 = pneg %p1531
      $region62: #{tpu_custom_call.1} parent=5 // pred_check_branch
        %1534 = sbr.rel (%p1532) target = $region64
      $region63: #{tpu_custom_call.1} parent=5 // pred_region
        %s1535 = ssub.s32 %s19, 2
        // Predicated region
        $region65: #{tpu_custom_call.1} parent=63 // pred_check
          %p1536 = pneg %p158
        $region66: #{tpu_custom_call.1} parent=63 // pred_check_branch
          %1538 = sbr.rel (%p1536) target = $region68
        $region67: #{tpu_custom_call.1} parent=63 // pred_region
          %s1539 = sand.u32 %s143, 1
          %s1540 = scalar_lea.sflag [#allocation4], %s1539
          %s1541 = sand.u32 %s143, 1
          %s1542 = smul.addr %s1541, 256
          %s1543 = scalar_lea.vmem [#allocation10], %s1542
          %1545 = dma.done %s1540, 4096
        $region68: #{tpu_custom_call.1} parent=63 // pred_fallthru
          _
      $region64: #{tpu_custom_call.1} parent=5 // pred_fallthru
        _
    $region6: #{tpu_custom_call.1} parent=1 // loop_footer
      %s23 = sadd.s32 1, %s19
    $region7: #{tpu_custom_call.1} parent=1 // loop_footer_branch
      %18 = sbr.rel target = $region3
    $region8: #{tpu_custom_call.1} parent=1 // loop_exit
      _
    %1546 = vsyncpa [#allocation3], 1
    %s1547 = scalar_lea.sflag [#allocation3], 1
    %1548 = vsyncpa %s1547, 1
    %1549 = vsyncpa [#allocation6], 1
    %1550 = vsyncpa [#allocation9], 1
    %1551 = vsyncpa [#allocation4], 1
    %s1552 = scalar_lea.sflag [#allocation4], 1
    %1553 = vsyncpa %s1552, 1

// kernel: tpu_custom_call.1
$region0: #{tpu_custom_call.1}
  #allocation0 [shape = 'u32[]', space=smem, size = 0x4, offset = 0x4, fixed_abs, tag = 'smem constant byte address 0x4 - core index']
  #allocation1 [shape = 'u32[72,128]{1,0:T(1,128)}', space=vmem, size = 0x9000, scoped, tag = 'internal scratch']
  %s0 = inlined_call_operand.hbm [shape: f32[512,128], index: 0, kind: input, shape index: {}]
  %s1 = inlined_call_operand.hbm [shape: bf16[128,256], index: 1, kind: input, shape index: {}]
  %s2 = inlined_call_operand.hbm [shape: f32[1,256], index: 2, kind: input, shape index: {}]
  %s3 = inlined_call_operand.hbm [shape: bf16[256,128], index: 3, kind: input, shape index: {}]
  %s4 = inlined_call_operand.vmem [shape: f32[1,128], index: 4, kind: input, shape index: {}]
  %s5 = inlined_call_operand.hbm [shape: f32[512,128], index: 5, kind: output, shape index: {}]
  %s6 = sld [smem:[#allocation0]]
  $region69: #{tpu_custom_call.1} parent=0
    _
  %s8 = ssub.s32 1, %s6
  %s9 = scalar_select 0, %s8, %s6
  $region1: #{tpu_custom_call.1} parent=0
    #allocation2 [shape = 'u8[262144]{0}', space=vmem, size = 0x40000, scoped, tag = 'input window, operand 0']
    #allocation3 [shape = 's32[2]{0}', space=sflag, size = 0x8, scoped, tag = 'scoped memory for tpu_custom_call.1']
    #allocation4 [shape = 's32[2]{0}', space=sflag, size = 0x8, scoped, tag = 'scoped memory for tpu_custom_call.1']
    #allocation5 [shape = 'u8[65536]{0}', space=vmem, size = 0x10000, scoped, tag = 'input window, operand 1, single buffered']
    #allocation6 [shape = 's32[1]{0}', space=sflag, size = 0x4, scoped, tag = 'scoped memory for tpu_custom_call.1']
    #allocation7 [shape = 'u8[1024]{0}', space=vmem, size = 0x400, scoped, tag = 'input window, operand 2, single buffered']
    #allocation8 [shape = 'u8[65536]{0}', space=vmem, size = 0x10000, scoped, tag = 'input window, operand 3, single buffered']
    #allocation9 [shape = 's32[1]{0}', space=sflag, size = 0x4, scoped, tag = 'scoped memory for tpu_custom_call.1']
    #allocation10 [shape = 'u8[262144]{0}', space=vmem, size = 0x40000, scoped, tag = 'output window, operand 0']
    %10 = vsyncpa [#allocation3], 0
    %s11 = scalar_lea.sflag [#allocation3], 1
    %12 = vsyncpa %s11, 0
    %13 = vsyncpa [#allocation6], 0
    %14 = vsyncpa [#allocation9], 0
    %15 = vsyncpa [#allocation4], 0
    %s16 = scalar_lea.sflag [#allocation4], 1
    %17 = vsyncpa %s16, 0
    loop: start=0, step=1, limit=4
    $region2: #{tpu_custom_call.1} parent=1 // loop_pre_header
      _
    $region3: #{tpu_custom_call.1} parent=1 // loop_header
      %s19 = sphi 0, %s23
      %p20 = scmp.ge.s32.totalorder %s19, 4
      %s29 = sphi 0, %s31
      %s32 = sphi 0, %s29
      %s33 = sphi 0, %s32
      %s49 = sphi 0, %s33
      %s53 = sphi 0, %s53
      %s55 = sphi 0, %s53
      %s56 = sphi 0, %s55
      %s70 = sphi 0, %s56
      %s74 = sphi 0, %s74
      %s76 = sphi 0, %s74
      %s77 = sphi 0, %s76
      %s91 = sphi 0, %s77
      %s95 = sphi 0, %s95
      %s97 = sphi 0, %s95
      %s98 = sphi 0, %s97
      %s112 = sphi 0, %s98
      %s116 = sphi 0, %s116
      %s118 = sphi 0, %s116
      %s119 = sphi 0, %s118
      %s133 = sphi 0, %s119
      %s139 = sphi 0, %s141
      %s142 = sphi 0, %s139
      %s143 = sphi 0, %s142
      %s159 = sphi 0, %s143
    $region4: #{tpu_custom_call.1} parent=1 // loop_header_branch
      %22 = sbr.rel (%p20) target = $region8
    $region5: #{tpu_custom_call.1} parent=1 // loop_body
      %s24 = ssub.s32 %s19, 1
      %s25 = ssub.s32 %s19, 2
      %s26 = sadd.s32 %s19, 1
      %s27 = ssub.s32 %s19, %s26
      %p28 = scmp.eq.s32.totalorder %s27, 0
      %s30 = sadd.s32 %s29, 1
      %s31 = scalar_select %p28, %s29, %s30
      %p34 = pneg %p28
      %p35 = scmp.eq.s32.totalorder %s19, 1
      %p36 = por %p34, %p35
      %p37 = scmp.ne.s32.totalorder %s29, %s32
      %p38 = scmp.eq.s32.totalorder %s19, 0
      %p39 = por %p37, %p38
      %p40 = scmp.ne.s32.totalorder %s29, %s32
      %p41 = scmp.eq.s32.totalorder %s24, 1
      %p42 = por %p40, %p41
      %p43 = scmp.ne.s32.totalorder %s32, %s33
      %p44 = scmp.eq.s32.totalorder %s24, 0
      %p45 = por %p43, %p44
      %p46 = scmp.ne.s32.totalorder %s32, %s33
      %p47 = scmp.eq.s32.totalorder %s25, 1
      %p48 = por %p46, %p47
      %p50 = scmp.ne.s32.totalorder %s33, %s49
      %p51 = scmp.eq.s32.totalorder %s25, 0
      %p52 = por %p50, %p51
      %s54 = sadd.s32 %s53, 1
      %p57 = scmp.eq.s32.totalorder %s19, 1
      %p58 = scmp.ne.s32.totalorder %s53, %s55
      %p59 = scmp.eq.s32.totalorder %s19, 0
      %p60 = por %p58, %p59
      %p61 = scmp.ne.s32.totalorder %s53, %s55
      %p62 = scmp.eq.s32.totalorder %s24, 1
      %p63 = por %p61, %p62
      %p64 = scmp.ne.s32.totalorder %s55, %s56
      %p65 = scmp.eq.s32.totalorder %s24, 0
      %p66 = por %p64, %p65
      %p67 = scmp.ne.s32.totalorder %s55, %s56
      %p68 = scmp.eq.s32.totalorder %s25, 1
      %p69 = por %p67, %p68
      %p71 = scmp.ne.s32.totalorder %s56, %s70
      %p72 = scmp.eq.s32.totalorder %s25, 0
      %p73 = por %p71, %p72
      %s75 = sadd.s32 %s74, 1
      %p78 = scmp.eq.s32.totalorder %s19, 1
      %p79 = scmp.ne.s32.totalorder %s74, %s76
      %p80 = scmp.eq.s32.totalorder %s19, 0
      %p81 = por %p79, %p80
      %p82 = scmp.ne.s32.totalorder %s74, %s76
      %p83 = scmp.eq.s32.totalorder %s24, 1
      %p84 = por %p82, %p83
      %p85 = scmp.ne.s32.totalorder %s76, %s77
      %p86 = scmp.eq.s32.totalorder %s24, 0
      %p87 = por %p85, %p86
      %p88 = scmp.ne.s32.totalorder %s76, %s77
      %p89 = scmp.eq.s32.totalorder %s25, 1
      %p90 = por %p88, %p89
      %p92 = scmp.ne.s32.totalorder %s77, %s91
      %p93 = scmp.eq.s32.totalorder %s25, 0
      %p94 = por %p92, %p93
      %s96 = sadd.s32 %s95, 1
      %p99 = scmp.eq.s32.totalorder %s19, 1
      %p100 = scmp.ne.s32.totalorder %s95, %s97
      %p101 = scmp.eq.s32.totalorder %s19, 0
      %p102 = por %p100, %p101
      %p103 = scmp.ne.s32.totalorder %s95, %s97
      %p104 = scmp.eq.s32.totalorder %s24, 1
      %p105 = por %p103, %p104
      %p106 = scmp.ne.s32.totalorder %s97, %s98
      %p107 = scmp.eq.s32.totalorder %s24, 0
      %p108 = por %p106, %p107
      %p109 = scmp.ne.s32.totalorder %s97, %s98
      %p110 = scmp.eq.s32.totalorder %s25, 1
      %p111 = por %p109, %p110
      %p113 = scmp.ne.s32.totalorder %s98, %s112
      %p114 = scmp.eq.s32.totalorder %s25, 0
      %p115 = por %p113, %p114
      %s117 = sadd.s32 %s116, 1
      %p120 = scmp.eq.s32.totalorder %s19, 1
      %p121 = scmp.ne.s32.totalorder %s116, %s118
      %p122 = scmp.eq.s32.totalorder %s19, 0
      %p123 = por %p121, %p122
      %p124 = scmp.ne.s32.totalorder %s116, %s118
      %p125 = scmp.eq.s32.totalorder %s24, 1
      %p126 = por %p124, %p125
      %p127 = scmp.ne.s32.totalorder %s118, %s119
      %p128 = scmp.eq.s32.totalorder %s24, 0
      %p129 = por %p127, %p128
      %p130 = scmp.ne.s32.totalorder %s118, %s119
      %p131 = scmp.eq.s32.totalorder %s25, 1
      %p132 = por %p130, %p131
      %p134 = scmp.ne.s32.totalorder %s119, %s133
      %p135 = scmp.eq.s32.totalorder %s25, 0
      %p136 = por %p134, %p135
      %s137 = ssub.s32 %s19, %s26
      %p138 = scmp.eq.s32.totalorder %s137, 0
      %s140 = sadd.s32 %s139, 1
      %s141 = scalar_select %p138, %s139, %s140
      %p144 = pneg %p138
      %p145 = scmp.eq.s32.totalorder %s19, 1
      %p146 = por %p144, %p145
      %p147 = scmp.ne.s32.totalorder %s139, %s142
      %p148 = scmp.eq.s32.totalorder %s19, 0
      %p149 = por %p147, %p148
      %p150 = scmp.ne.s32.totalorder %s139, %s142
      %p151 = scmp.eq.s32.totalorder %s24, 1
      %p152 = por %p150, %p151
      %p153 = scmp.ne.s32.totalorder %s142, %s143
      %p154 = scmp.eq.s32.totalorder %s24, 0
      %p155 = por %p153, %p154
      %p156 = scmp.ne.s32.totalorder %s142, %s143
      %p157 = scmp.eq.s32.totalorder %s25, 1
      %p158 = por %p156, %p157
      %p160 = scmp.ne.s32.totalorder %s143, %s159
      %p161 = scmp.eq.s32.totalorder %s25, 0
      %p162 = por %p160, %p161
      %p163 = scmp.le.s32.totalorder 1, %s19
      %p164 = scmp.lt.s32.totalorder %s19, 3
      %p165 = pnand %p163, %p164
      %p166 = pneg %p165
      // Predicated region
      $region9: #{tpu_custom_call.1} parent=5 // pred_check
        _
      $region10: #{tpu_custom_call.1} parent=5 // pred_check_branch
        %168 = sbr.rel (%p165) target = $region12
      $region11: #{tpu_custom_call.1} parent=5 // pred_region
        %s169 = ssub.s32 %s19, 1
        // Predicated region
        $region13: #{tpu_custom_call.1} parent=11 // pred_check
          %p170 = pneg %p66
        $region14: #{tpu_custom_call.1} parent=11 // pred_check_branch
          %172 = sbr.rel (%p170) target = $region16
        $region15: #{tpu_custom_call.1} parent=11 // pred_region
          %174 = vsyncadd [#allocation6], 0
          %s175 = sshll.u32 %s1, 4
          %s176 = int_to_ptr.hbm [resolvable:$true] %s175
          %s177 = sshll.u32 [#allocation5], 4
          %s178 = int_to_ptr.vmem [resolvable:$true] %s177
          %183 = dma.hbm_to_vmem [thread:$0]  %s176, 2048, %s178, [#allocation6], 128, 128, 8
        $region16: #{tpu_custom_call.1} parent=11 // pred_fallthru
          _
        // Predicated region
        $region17: #{tpu_custom_call.1} parent=11 // pred_check
          %p184 = pneg %p87
        $region18: #{tpu_custom_call.1} parent=11 // pred_check_branch
          %186 = sbr.rel (%p184) target = $region20
        $region19: #{tpu_custom_call.1} parent=11 // pred_region
          %188 = vsyncadd [#allocation6], 0
          %s190 = sshll.u32 %s2, 4
          %s191 = int_to_ptr.hbm [resolvable:$true] %s190
          %s192 = sshll.u32 [#allocation7], 4
          %s193 = int_to_ptr.vmem [resolvable:$true] %s192
          %195 = dma.hbm_to_vmem [thread:$0]  %s191, 32, %s193, [#allocation6]
        $region20: #{tpu_custom_call.1} parent=11 // pred_fallthru
          _
        // Predicated region
        $region21: #{tpu_custom_call.1} parent=11 // pred_check
          %p196 = pneg %p108
        $region22: #{tpu_custom_call.1} parent=11 // pred_check_branch
          %198 = sbr.rel (%p196) target = $region24
        $region23: #{tpu_custom_call.1} parent=11 // pred_region
          %200 = vsyncadd [#allocation9], 0
          %s201 = sshll.u32 %s3, 4
          %s202 = int_to_ptr.hbm [resolvable:$true] %s201
          %s203 = sshll.u32 [#allocation8], 4
          %s204 = int_to_ptr.vmem [resolvable:$true] %s203
          %209 = dma.hbm_to_vmem [thread:$0]  %s202, 2048, %s204, [#allocation9], 64, 64, 4
        $region24: #{tpu_custom_call.1} parent=11 // pred_fallthru
          _
        // Predicated region
        $region25: #{tpu_custom_call.1} parent=11 // pred_check
          %p210 = pneg %p129
        $region26: #{tpu_custom_call.1} parent=11 // pred_check_branch
          %212 = sbr.rel (%p210) target = $region28
        $region27: #{tpu_custom_call.1} parent=11 // pred_region
          _
        $region28: #{tpu_custom_call.1} parent=11 // pred_fallthru
          _
      $region12: #{tpu_custom_call.1} parent=5 // pred_fallthru
        _
      %p213 = scmp.lt.s32.totalorder %s19, 2
      // Predicated region
      $region29: #{tpu_custom_call.1} parent=5 // pred_check
        %p214 = pneg %p213
      $region30: #{tpu_custom_call.1} parent=5 // pred_check_branch
        %216 = sbr.rel (%p214) target = $region32
      $region31: #{tpu_custom_call.1} parent=5 // pred_region
        // Predicated region
        $region33: #{tpu_custom_call.1} parent=31 // pred_check
          %p217 = pneg %p39
        $region34: #{tpu_custom_call.1} parent=31 // pred_check_branch
          %219 = sbr.rel (%p217) target = $region36
        $region35: #{tpu_custom_call.1} parent=31 // pred_region
          %s220 = sand.u32 %s29, 1
          %s221 = scalar_lea.sflag [#allocation3], %s220
          %s222 = sand.u32 %s29, 1
          %s223 = smul.addr %s222, 256
          %s224 = scalar_lea.vmem [#allocation2], %s223
          %s225 = smul.u32 32, %s19
          %227 = vsyncadd %s221, 0
          %s228 = smul.addr %s225, 8
          %s229 = scalar_lea.hbm %s0, %s228
          %s230 = sshll.u32 %s229, 4
          %s231 = int_to_ptr.hbm [resolvable:$true] %s230
          %s232 = sshll.u32 %s224, 4
          %s233 = int_to_ptr.vmem [resolvable:$true] %s232
          %238 = dma.hbm_to_vmem [thread:$0]  %s231, 4096, %s233, %s221, 128, 128, 8
        $region36: #{tpu_custom_call.1} parent=31 // pred_fallthru
          _
      $region32: #{tpu_custom_call.1} parent=5 // pred_fallthru
        _
      %p239 = scmp.le.s32.totalorder 1, %s19
      %p240 = scmp.lt.s32.totalorder %s19, 3
      %p241 = pnand %p239, %p240
      %p242 = pneg %p241
      // Predicated region
      $region37: #{tpu_custom_call.1} parent=5 // pred_check
        _
      $region38: #{tpu_custom_call.1} parent=5 // pred_check_branch
        %244 = sbr.rel (%p241) target = $region40
      $region39: #{tpu_custom_call.1} parent=5 // pred_region
        %s245 = ssub.s32 %s19, 1
        %s246 = sand.u32 %s32, 1
        %s247 = scalar_lea.sflag [#allocation3], %s246
        %s248 = sand.u32 %s32, 1
        %s249 = smul.addr %s248, 256
        %s250 = scalar_lea.vmem [#allocation2], %s249
        // Predicated region
        $region41: #{tpu_custom_call.1} parent=39 // pred_check
          %p251 = pneg %p45
        $region42: #{tpu_custom_call.1} parent=39 // pred_check_branch
          %253 = sbr.rel (%p251) target = $region44
        $region43: #{tpu_custom_call.1} parent=39 // pred_region
          %255 = dma.done %s247, 4096
        $region44: #{tpu_custom_call.1} parent=39 // pred_fallthru
          _
        // Predicated region
        $region45: #{tpu_custom_call.1} parent=39 // pred_check
          %p256 = pneg %p66
        $region46: #{tpu_custom_call.1} parent=39 // pred_check_branch
          %258 = sbr.rel (%p256) target = $region48
        $region47: #{tpu_custom_call.1} parent=39 // pred_region
          %260 = dma.done [#allocation6], 2048
        $region48: #{tpu_custom_call.1} parent=39 // pred_fallthru
          _
        // Predicated region
        $region49: #{tpu_custom_call.1} parent=39 // pred_check
          %p261 = pneg %p87
        $region50: #{tpu_custom_call.1} parent=39 // pred_check_branch
          %263 = sbr.rel (%p261) target = $region52
        $region51: #{tpu_custom_call.1} parent=39 // pred_region
          %265 = dma.done [#allocation6], 32
        $region52: #{tpu_custom_call.1} parent=39 // pred_fallthru
          _
        // Predicated region
        $region53: #{tpu_custom_call.1} parent=39 // pred_check
          %p266 = pneg %p108
        $region54: #{tpu_custom_call.1} parent=39 // pred_check_branch
          %268 = sbr.rel (%p266) target = $region56
        $region55: #{tpu_custom_call.1} parent=39 // pred_region
          %270 = dma.done [#allocation9], 2048
        $region56: #{tpu_custom_call.1} parent=39 // pred_fallthru
          _
        %s271 = sand.u32 %s32, 1
        %s272 = scalar_lea.sflag [#allocation3], %s271
        %s273 = sand.u32 %s32, 1
        %s274 = smul.addr %s273, 256
        %s275 = scalar_lea.vmem [#allocation2], %s274
        %p276 = pneg %p45
        %p277 = pneg %p42
        %p278 = pneg %p66
        %p279 = pneg %p63
        %p280 = pneg %p87
        %p281 = pneg %p84
        %p282 = pneg %p108
        %p283 = pneg %p105
        %p284 = pneg %p129
        %p285 = pneg %p126
        %p286 = pneg %p155
        %p287 = pneg %p152
        %s288 = sand.u32 %s142, 1
        %s289 = scalar_lea.sflag [#allocation4], %s288
        %s290 = sand.u32 %s142, 1
        %s291 = smul.addr %s290, 256
        %s292 = scalar_lea.vmem [#allocation10], %s291
        %s293 = smul.u32 32, %s24
        %s294 = smul.u32 32, %s24
        %v295 = vld [vmem:[%s250] sm:$0xff]
        %v296 = vld [vmem:[%s250 + $0x8] sm:$0xff]
        %v297 = vld [vmem:[%s250 + $0x10] sm:$0xff]
        %v298 = vld [vmem:[%s250 + $0x18] sm:$0xff]
        %v299 = vld [vmem:[%s250 + $0x20] sm:$0xff]
        %v300 = vld [vmem:[%s250 + $0x28] sm:$0xff]
        %v301 = vld [vmem:[%s250 + $0x30] sm:$0xff]
        %v302 = vld [vmem:[%s250 + $0x38] sm:$0xff]
        %v303 = vld [vmem:[%s250 + $0x40] sm:$0xff]
        %v304 = vld [vmem:[%s250 + $0x48] sm:$0xff]
        %v305 = vld [vmem:[%s250 + $0x50] sm:$0xff]
        %v306 = vld [vmem:[%s250 + $0x58] sm:$0xff]
        %v307 = vld [vmem:[%s250 + $0x60] sm:$0xff]
        %v308 = vld [vmem:[%s250 + $0x68] sm:$0xff]
        %v309 = vld [vmem:[%s250 + $0x70] sm:$0xff]
        %v310 = vld [vmem:[%s250 + $0x78] sm:$0xff]
        %v311 = vld [vmem:[%s250 + $0x80] sm:$0xff]
        %v312 = vld [vmem:[%s250 + $0x88] sm:$0xff]
        %v313 = vld [vmem:[%s250 + $0x90] sm:$0xff]
        %v314 = vld [vmem:[%s250 + $0x98] sm:$0xff]
        %v315 = vld [vmem:[%s250 + $0xa0] sm:$0xff]
        %v316 = vld [vmem:[%s250 + $0xa8] sm:$0xff]
        %v317 = vld [vmem:[%s250 + $0xb0] sm:$0xff]
        %v318 = vld [vmem:[%s250 + $0xb8] sm:$0xff]
        %v319 = vld [vmem:[%s250 + $0xc0] sm:$0xff]
        %v320 = vld [vmem:[%s250 + $0xc8] sm:$0xff]
        %v321 = vld [vmem:[%s250 + $0xd0] sm:$0xff]
        %v322 = vld [vmem:[%s250 + $0xd8] sm:$0xff]
        %v323 = vld [vmem:[%s250 + $0xe0] sm:$0xff]
        %v324 = vld [vmem:[%s250 + $0xe8] sm:$0xff]
        %v325 = vld [vmem:[%s250 + $0xf0] sm:$0xff]
        %v326 = vld [vmem:[%s250 + $0xf8] sm:$0xff]
        %v327 = vpack.c.bf16 %v296, %v295
        %v328 = vpack.c.bf16 %v298, %v297
        %v329 = vpack.c.bf16 %v300, %v299
        %v330 = vpack.c.bf16 %v302, %v301
        %v331 = vpack.c.bf16 %v304, %v303
        %v332 = vpack.c.bf16 %v306, %v305
        %v333 = vpack.c.bf16 %v308, %v307
        %v334 = vpack.c.bf16 %v310, %v309
        %v335 = vpack.c.bf16 %v312, %v311
        %v336 = vpack.c.bf16 %v314, %v313
        %v337 = vpack.c.bf16 %v316, %v315
        %v338 = vpack.c.bf16 %v318, %v317
        %v339 = vpack.c.bf16 %v320, %v319
        %v340 = vpack.c.bf16 %v322, %v321
        %v341 = vpack.c.bf16 %v324, %v323
        %v342 = vpack.c.bf16 %v326, %v325
        %v343 = vld [vmem:[#allocation5] sm:$0xff]
        %v344 = vld [vmem:[#allocation5 + $0x8] sm:$0xff]
        %v345 = vld [vmem:[#allocation5 + $0x10] sm:$0xff]
        %v346 = vld [vmem:[#allocation5 + $0x18] sm:$0xff]
        %v347 = vld [vmem:[#allocation5 + $0x20] sm:$0xff]
        %v348 = vld [vmem:[#allocation5 + $0x28] sm:$0xff]
        %v349 = vld [vmem:[#allocation5 + $0x30] sm:$0xff]
        %v350 = vld [vmem:[#allocation5 + $0x38] sm:$0xff]
        %v351 = vld [vmem:[#allocation5 + $0x40] sm:$0xff]
        %v352 = vld [vmem:[#allocation5 + $0x48] sm:$0xff]
        %v353 = vld [vmem:[#allocation5 + $0x50] sm:$0xff]
        %v354 = vld [vmem:[#allocation5 + $0x58] sm:$0xff]
        %v355 = vld [vmem:[#allocation5 + $0x60] sm:$0xff]
        %v356 = vld [vmem:[#allocation5 + $0x68] sm:$0xff]
        %v357 = vld [vmem:[#allocation5 + $0x70] sm:$0xff]
        %v358 = vld [vmem:[#allocation5 + $0x78] sm:$0xff]
        %v359 = vld [vmem:[#allocation7] sm:$0x3]
        %v361 = vperm.slane %v359, 0
        %v362 = vperm.slane %v359, 1
        %v381 = vunpack.c.l.b16 %v343
        %v382 = vunpack.c.h.b16 %v343
        %v383 = vunpack.c.l.b16 %v344
        %v384 = vunpack.c.h.b16 %v344
        %v385 = vunpack.c.l.b16 %v345
        %v386 = vunpack.c.h.b16 %v345
        %v387 = vunpack.c.l.b16 %v346
        %v388 = vunpack.c.h.b16 %v346
        %v389 = vunpack.c.l.b16 %v347
        %v390 = vunpack.c.h.b16 %v347
        %v391 = vunpack.c.l.b16 %v348
        %v392 = vunpack.c.h.b16 %v348
        %v393 = vunpack.c.l.b16 %v349
        %v394 = vunpack.c.h.b16 %v349
        %v395 = vunpack.c.l.b16 %v350
        %v396 = vunpack.c.h.b16 %v350
        %v397 = vunpack.c.l.b16 %v351
        %v398 = vunpack.c.h.b16 %v351
        %v399 = vunpack.c.l.b16 %v352
        %v400 = vunpack.c.h.b16 %v352
        %v401 = vunpack.c.l.b16 %v353
        %v402 = vunpack.c.h.b16 %v353
        %v403 = vunpack.c.l.b16 %v354
        %v404 = vunpack.c.h.b16 %v354
        %v405 = vunpack.c.l.b16 %v355
        %v406 = vunpack.c.h.b16 %v355
        %v407 = vunpack.c.l.b16 %v356
        %v408 = vunpack.c.h.b16 %v356
        %v409 = vunpack.c.l.b16 %v357
        %v410 = vunpack.c.h.b16 %v357
        %v411 = vunpack.c.l.b16 %v358
        %v412 = vunpack.c.h.b16 %v358
        %v413 = vpack.c.b16 %v383, %v381
        %v414 = vpack.c.b16 %v384, %v382
        %v415 = vpack.c.b16 %v387, %v385
        %v416 = vpack.c.b16 %v388, %v386
        %v417 = vpack.c.b16 %v391, %v389
        %v418 = vpack.c.b16 %v392, %v390
        %v419 = vpack.c.b16 %v395, %v393
        %v420 = vpack.c.b16 %v396, %v394
        %v421 = vpack.c.b16 %v399, %v397
        %v422 = vpack.c.b16 %v400, %v398
        %v423 = vpack.c.b16 %v403, %v401
        %v424 = vpack.c.b16 %v404, %v402
        %v425 = vpack.c.b16 %v407, %v405
        %v426 = vpack.c.b16 %v408, %v406
        %v427 = vpack.c.b16 %v411, %v409
        %v428 = vpack.c.b16 %v412, %v410
        %445 = vmatpush.bf16.msra.mxu0 %v427
        %446 = vmatpush.bf16.msra.mxu0 %v425
        %447 = vmatpush.bf16.msra.mxu0 %v423
        %448 = vmatpush.bf16.msra.mxu0 %v421
        %449 = vmatpush.bf16.msra.mxu0 %v419
        %450 = vmatpush.bf16.msra.mxu0 %v417
        %451 = vmatpush.bf16.msra.mxu0 %v415
        %452 = vmatpush.bf16.msra.mxu0 %v413
        %453 = vmatmul.bf16.gmra.mxu0 %v327
        %v454 = vpop.f32.mrf.mxu0
        %v455 = vadd.f32 %v361, %v454
        %v456 = vpop.f32.mrf.mxu0
        %v457 = vadd.f32 %v361, %v456
        %458 = vmatmul.bf16.gmra.mxu0 %v328
        %v459 = vpop.f32.mrf.mxu0
        %v460 = vadd.f32 %v361, %v459
        %v461 = vpop.f32.mrf.mxu0
        %v462 = vadd.f32 %v361, %v461
        %463 = vmatmul.bf16.gmra.mxu0 %v329
        %v464 = vpop.f32.mrf.mxu0
        %v465 = vadd.f32 %v361, %v464
        %v466 = vpop.f32.mrf.mxu0
        %v467 = vadd.f32 %v361, %v466
        %468 = vmatmul.bf16.gmra.mxu0 %v330
        %v469 = vpop.f32.mrf.mxu0
        %v470 = vadd.f32 %v361, %v469
        %v471 = vpop.f32.mrf.mxu0
        %v472 = vadd.f32 %v361, %v471
        %473 = vmatmul.bf16.gmra.mxu0 %v331
        %v474 = vpop.f32.mrf.mxu0
        %v475 = vadd.f32 %v361, %v474
        %v476 = vpop.f32.mrf.mxu0
        %v477 = vadd.f32 %v361, %v476
        %478 = vmatmul.bf16.gmra.mxu0 %v332
        %v479 = vpop.f32.mrf.mxu0
        %v480 = vadd.f32 %v361, %v479
        %v481 = vpop.f32.mrf.mxu0
        %v482 = vadd.f32 %v361, %v481
        %483 = vmatmul.bf16.gmra.mxu0 %v333
        %v484 = vpop.f32.mrf.mxu0
        %v485 = vadd.f32 %v361, %v484
        %v486 = vpop.f32.mrf.mxu0
        %v487 = vadd.f32 %v361, %v486
        %488 = vmatmul.bf16.gmra.mxu0 %v334
        %v489 = vpop.f32.mrf.mxu0
        %v490 = vadd.f32 %v361, %v489
        %v491 = vpop.f32.mrf.mxu0
        %v492 = vadd.f32 %v361, %v491
        %493 = vmatmul.bf16.gmra.mxu0 %v335
        %v494 = vpop.f32.mrf.mxu0
        %v495 = vadd.f32 %v361, %v494
        %v496 = vpop.f32.mrf.mxu0
        %v497 = vadd.f32 %v361, %v496
        %498 = vmatmul.bf16.gmra.mxu0 %v336
        %v499 = vpop.f32.mrf.mxu0
        %v500 = vadd.f32 %v361, %v499
        %v501 = vpop.f32.mrf.mxu0
        %v502 = vadd.f32 %v361, %v501
        %503 = vmatmul.bf16.gmra.mxu0 %v337
        %v504 = vpop.f32.mrf.mxu0
        %v505 = vadd.f32 %v361, %v504
        %v506 = vpop.f32.mrf.mxu0
        %v507 = vadd.f32 %v361, %v506
        %508 = vmatmul.bf16.gmra.mxu0 %v338
        %v509 = vpop.f32.mrf.mxu0
        %v510 = vadd.f32 %v361, %v509
        %v511 = vpop.f32.mrf.mxu0
        %v512 = vadd.f32 %v361, %v511
        %513 = vmatmul.bf16.gmra.mxu0 %v339
        %v514 = vpop.f32.mrf.mxu0
        %v515 = vadd.f32 %v361, %v514
        %v516 = vpop.f32.mrf.mxu0
        %v517 = vadd.f32 %v361, %v516
        %518 = vmatmul.bf16.gmra.mxu0 %v340
        %v519 = vpop.f32.mrf.mxu0
        %v520 = vadd.f32 %v361, %v519
        %v521 = vpop.f32.mrf.mxu0
        %v522 = vadd.f32 %v361, %v521
        %523 = vmatmul.bf16.gmra.mxu0 %v341
        %v524 = vpop.f32.mrf.mxu0
        %v525 = vadd.f32 %v361, %v524
        %v526 = vpop.f32.mrf.mxu0
        %v527 = vadd.f32 %v361, %v526
        %528 = vmatmul.bf16.gmra.mxu0 %v342
        %v529 = vpop.f32.mrf.mxu0
        %v530 = vadd.f32 %v361, %v529
        %v531 = vpop.f32.mrf.mxu0
        %v532 = vadd.f32 %v361, %v531
        %533 = vdwg.mxu0
        %534 = vmatpush.bf16.msra.mxu0 %v428
        %535 = vmatpush.bf16.msra.mxu0 %v426
        %536 = vmatpush.bf16.msra.mxu0 %v424
        %537 = vmatpush.bf16.msra.mxu0 %v422
        %538 = vmatpush.bf16.msra.mxu0 %v420
        %539 = vmatpush.bf16.msra.mxu0 %v418
        %540 = vmatpush.bf16.msra.mxu0 %v416
        %541 = vmatpush.bf16.msra.mxu0 %v414
        %542 = vmatmul.bf16.gmra.mxu0 %v327
        %v543 = vpop.f32.mrf.mxu0
        %v544 = vadd.f32 %v362, %v543
        %v545 = vpop.f32.mrf.mxu0
        %v546 = vadd.f32 %v362, %v545
        %547 = vmatmul.bf16.gmra.mxu0 %v328
        %v548 = vpop.f32.mrf.mxu0
        %v549 = vadd.f32 %v362, %v548
        %v550 = vpop.f32.mrf.mxu0
        %v551 = vadd.f32 %v362, %v550
        %552 = vmatmul.bf16.gmra.mxu0 %v329
        %v553 = vpop.f32.mrf.mxu0
        %v554 = vadd.f32 %v362, %v553
        %v555 = vpop.f32.mrf.mxu0
        %v556 = vadd.f32 %v362, %v555
        %557 = vmatmul.bf16.gmra.mxu0 %v330
        %v558 = vpop.f32.mrf.mxu0
        %v559 = vadd.f32 %v362, %v558
        %v560 = vpop.f32.mrf.mxu0
        %v561 = vadd.f32 %v362, %v560
        %562 = vmatmul.bf16.gmra.mxu0 %v331
        %v563 = vpop.f32.mrf.mxu0
        %v564 = vadd.f32 %v362, %v563
        %v565 = vpop.f32.mrf.mxu0
        %v566 = vadd.f32 %v362, %v565
        %567 = vmatmul.bf16.gmra.mxu0 %v332
        %v568 = vpop.f32.mrf.mxu0
        %v569 = vadd.f32 %v362, %v568
        %v570 = vpop.f32.mrf.mxu0
        %v571 = vadd.f32 %v362, %v570
        %572 = vmatmul.bf16.gmra.mxu0 %v333
        %v573 = vpop.f32.mrf.mxu0
        %v574 = vadd.f32 %v362, %v573
        %v575 = vpop.f32.mrf.mxu0
        %v576 = vadd.f32 %v362, %v575
        %577 = vmatmul.bf16.gmra.mxu0 %v334
        %v578 = vpop.f32.mrf.mxu0
        %v579 = vadd.f32 %v362, %v578
        %v580 = vpop.f32.mrf.mxu0
        %v581 = vadd.f32 %v362, %v580
        %582 = vmatmul.bf16.gmra.mxu0 %v335
        %v583 = vpop.f32.mrf.mxu0
        %v584 = vadd.f32 %v362, %v583
        %v585 = vpop.f32.mrf.mxu0
        %v586 = vadd.f32 %v362, %v585
        %587 = vmatmul.bf16.gmra.mxu0 %v336
        %v588 = vpop.f32.mrf.mxu0
        %v589 = vadd.f32 %v362, %v588
        %v590 = vpop.f32.mrf.mxu0
        %v591 = vadd.f32 %v362, %v590
        %592 = vmatmul.bf16.gmra.mxu0 %v337
        %v593 = vpop.f32.mrf.mxu0
        %v594 = vadd.f32 %v362, %v593
        %v595 = vpop.f32.mrf.mxu0
        %v596 = vadd.f32 %v362, %v595
        %597 = vmatmul.bf16.gmra.mxu0 %v338
        %v598 = vpop.f32.mrf.mxu0
        %v599 = vadd.f32 %v362, %v598
        %v600 = vpop.f32.mrf.mxu0
        %v601 = vadd.f32 %v362, %v600
        %602 = vmatmul.bf16.gmra.mxu0 %v339
        %v603 = vpop.f32.mrf.mxu0
        %v604 = vadd.f32 %v362, %v603
        %v605 = vpop.f32.mrf.mxu0
        %v606 = vadd.f32 %v362, %v605
        %607 = vmatmul.bf16.gmra.mxu0 %v340
        %v608 = vpop.f32.mrf.mxu0
        %v609 = vadd.f32 %v362, %v608
        %v610 = vpop.f32.mrf.mxu0
        %v611 = vadd.f32 %v362, %v610
        %612 = vmatmul.bf16.gmra.mxu0 %v341
        %v613 = vpop.f32.mrf.mxu0
        %v614 = vadd.f32 %v362, %v613
        %v615 = vpop.f32.mrf.mxu0
        %v616 = vadd.f32 %v362, %v615
        %617 = vmatmul.bf16.gmra.mxu0 %v342
        %v618 = vpop.f32.mrf.mxu0
        %v619 = vadd.f32 %v362, %v618
        %v620 = vpop.f32.mrf.mxu0
        %v621 = vadd.f32 %v362, %v620
        %622 = vdwg.mxu0
        %v623 = vmul.f32 %v455, %v455
        %v624 = vmul.f32 %v544, %v544
        %v625 = vmul.f32 %v457, %v457
        %v626 = vmul.f32 %v546, %v546
        %v627 = vmul.f32 %v460, %v460
        %v628 = vmul.f32 %v549, %v549
        %v629 = vmul.f32 %v462, %v462
        %v630 = vmul.f32 %v551, %v551
        %v631 = vmul.f32 %v465, %v465
        %v632 = vmul.f32 %v554, %v554
        %v633 = vmul.f32 %v467, %v467
        %v634 = vmul.f32 %v556, %v556
        %v635 = vmul.f32 %v470, %v470
        %v636 = vmul.f32 %v559, %v559
        %v637 = vmul.f32 %v472, %v472
        %v638 = vmul.f32 %v561, %v561
        %v639 = vmul.f32 %v475, %v475
        %v640 = vmul.f32 %v564, %v564
        %v641 = vmul.f32 %v477, %v477
        %v642 = vmul.f32 %v566, %v566
        %v643 = vmul.f32 %v480, %v480
        %v644 = vmul.f32 %v569, %v569
        %v645 = vmul.f32 %v482, %v482
        %v646 = vmul.f32 %v571, %v571
        %v647 = vmul.f32 %v485, %v485
        %v648 = vmul.f32 %v574, %v574
        %v649 = vmul.f32 %v487, %v487
        %v650 = vmul.f32 %v576, %v576
        %v651 = vmul.f32 %v490, %v490
        %v652 = vmul.f32 %v579, %v579
        %v653 = vmul.f32 %v492, %v492
        %v654 = vmul.f32 %v581, %v581
        %v655 = vmul.f32 %v495, %v495
        %v656 = vmul.f32 %v584, %v584
        %v657 = vmul.f32 %v497, %v497
        %v658 = vmul.f32 %v586, %v586
        %v659 = vmul.f32 %v500, %v500
        %v660 = vmul.f32 %v589, %v589
        %v661 = vmul.f32 %v502, %v502
        %v662 = vmul.f32 %v591, %v591
        %v663 = vmul.f32 %v505, %v505
        %v664 = vmul.f32 %v594, %v594
        %v665 = vmul.f32 %v507, %v507
        %v666 = vmul.f32 %v596, %v596
        %v667 = vmul.f32 %v510, %v510
        %v668 = vmul.f32 %v599, %v599
        %v669 = vmul.f32 %v512, %v512
        %v670 = vmul.f32 %v601, %v601
        %v671 = vmul.f32 %v515, %v515
        %v672 = vmul.f32 %v604, %v604
        %v673 = vmul.f32 %v517, %v517
        %v674 = vmul.f32 %v606, %v606
        %v675 = vmul.f32 %v520, %v520
        %v676 = vmul.f32 %v609, %v609
        %v677 = vmul.f32 %v522, %v522
        %v678 = vmul.f32 %v611, %v611
        %v679 = vmul.f32 %v525, %v525
        %v680 = vmul.f32 %v614, %v614
        %v681 = vmul.f32 %v527, %v527
        %v682 = vmul.f32 %v616, %v616
        %v683 = vmul.f32 %v530, %v530
        %v684 = vmul.f32 %v619, %v619
        %v685 = vmul.f32 %v532, %v532
        %v686 = vmul.f32 %v621, %v621
        %v687 = vmul.f32 %v623, 0.035677407
        %v688 = vmul.f32 %v624, 0.035677407
        %v689 = vmul.f32 %v625, 0.035677407
        %v690 = vmul.f32 %v626, 0.035677407
        %v691 = vmul.f32 %v627, 0.035677407
        %v692 = vmul.f32 %v628, 0.035677407
        %v693 = vmul.f32 %v629, 0.035677407
        %v694 = vmul.f32 %v630, 0.035677407
        %v695 = vmul.f32 %v631, 0.035677407
        %v696 = vmul.f32 %v632, 0.035677407
        %v697 = vmul.f32 %v633, 0.035677407
        %v698 = vmul.f32 %v634, 0.035677407
        %v699 = vmul.f32 %v635, 0.035677407
        %v700 = vmul.f32 %v636, 0.035677407
        %v701 = vmul.f32 %v637, 0.035677407
        %v702 = vmul.f32 %v638, 0.035677407
        %v703 = vmul.f32 %v639, 0.035677407
        %v704 = vmul.f32 %v640, 0.035677407
        %v705 = vmul.f32 %v641, 0.035677407
        %v706 = vmul.f32 %v642, 0.035677407
        %v707 = vmul.f32 %v643, 0.035677407
        %v708 = vmul.f32 %v644, 0.035677407
        %v709 = vmul.f32 %v645, 0.035677407
        %v710 = vmul.f32 %v646, 0.035677407
        %v711 = vmul.f32 %v647, 0.035677407
        %v712 = vmul.f32 %v648, 0.035677407
        %v713 = vmul.f32 %v649, 0.035677407
        %v714 = vmul.f32 %v650, 0.035677407
        %v715 = vmul.f32 %v651, 0.035677407
        %v716 = vmul.f32 %v652, 0.035677407
        %v717 = vmul.f32 %v653, 0.035677407
        %v718 = vmul.f32 %v654, 0.035677407
        %v719 = vmul.f32 %v655, 0.035677407
        %v720 = vmul.f32 %v656, 0.035677407
        %v721 = vmul.f32 %v657, 0.035677407
        %v722 = vmul.f32 %v658, 0.035677407
        %v723 = vmul.f32 %v659, 0.035677407
        %v724 = vmul.f32 %v660, 0.035677407
        %v725 = vmul.f32 %v661, 0.035677407
        %v726 = vmul.f32 %v662, 0.035677407
        %v727 = vmul.f32 %v663, 0.035677407
        %v728 = vmul.f32 %v664, 0.035677407
        %v729 = vmul.f32 %v665, 0.035677407
        %v730 = vmul.f32 %v666, 0.035677407
        %v731 = vmul.f32 %v667, 0.035677407
        %v732 = vmul.f32 %v668, 0.035677407
        %v733 = vmul.f32 %v669, 0.035677407
        %v734 = vmul.f32 %v670, 0.035677407
        %v735 = vmul.f32 %v671, 0.035677407
        %v736 = vmul.f32 %v672, 0.035677407
        %v737 = vmul.f32 %v673, 0.035677407
        %v738 = vmul.f32 %v674, 0.035677407
        %v739 = vmul.f32 %v675, 0.035677407
        %v740 = vmul.f32 %v676, 0.035677407
        %v741 = vmul.f32 %v677, 0.035677407
        %v742 = vmul.f32 %v678, 0.035677407
        %v743 = vmul.f32 %v679, 0.035677407
        %v744 = vmul.f32 %v680, 0.035677407
        %v745 = vmul.f32 %v681, 0.035677407
        %v746 = vmul.f32 %v682, 0.035677407
        %v747 = vmul.f32 %v683, 0.035677407
        %v748 = vmul.f32 %v684, 0.035677407
        %v749 = vmul.f32 %v685, 0.035677407
        %v750 = vmul.f32 %v686, 0.035677407
        %v751 = vadd.f32 %v687, 0.7978846
        %v752 = vadd.f32 %v688, 0.7978846
        %v753 = vadd.f32 %v689, 0.7978846
        %v754 = vadd.f32 %v690, 0.7978846
        %v755 = vadd.f32 %v691, 0.7978846
        %v756 = vadd.f32 %v692, 0.7978846
        %v757 = vadd.f32 %v693, 0.7978846
        %v758 = vadd.f32 %v694, 0.7978846
        %v759 = vadd.f32 %v695, 0.7978846
        %v760 = vadd.f32 %v696, 0.7978846
        %v761 = vadd.f32 %v697, 0.7978846
        %v762 = vadd.f32 %v698, 0.7978846
        %v763 = vadd.f32 %v699, 0.7978846
        %v764 = vadd.f32 %v700, 0.7978846
        %v765 = vadd.f32 %v701, 0.7978846
        %v766 = vadd.f32 %v702, 0.7978846
        %v767 = vadd.f32 %v703, 0.7978846
        %v768 = vadd.f32 %v704, 0.7978846
        %v769 = vadd.f32 %v705, 0.7978846
        %v770 = vadd.f32 %v706, 0.7978846
        %v771 = vadd.f32 %v707, 0.7978846
        %v772 = vadd.f32 %v708, 0.7978846
        %v773 = vadd.f32 %v709, 0.7978846
        %v774 = vadd.f32 %v710, 0.7978846
        %v775 = vadd.f32 %v711, 0.7978846
        %v776 = vadd.f32 %v712, 0.7978846
        %v777 = vadd.f32 %v713, 0.7978846
        %v778 = vadd.f32 %v714, 0.7978846
        %v779 = vadd.f32 %v715, 0.7978846
        %v780 = vadd.f32 %v716, 0.7978846
        %v781 = vadd.f32 %v717, 0.7978846
        %v782 = vadd.f32 %v718, 0.7978846
        %v783 = vadd.f32 %v719, 0.7978846
        %v784 = vadd.f32 %v720, 0.7978846
        %v785 = vadd.f32 %v721, 0.7978846
        %v786 = vadd.f32 %v722, 0.7978846
        %v787 = vadd.f32 %v723, 0.7978846
        %v788 = vadd.f32 %v724, 0.7978846
        %v789 = vadd.f32 %v725, 0.7978846
        %v790 = vadd.f32 %v726, 0.7978846
        %v791 = vadd.f32 %v727, 0.7978846
        %v792 = vadd.f32 %v728, 0.7978846
        %v793 = vadd.f32 %v729, 0.7978846
        %v794 = vadd.f32 %v730, 0.7978846
        %v795 = vadd.f32 %v731, 0.7978846
        %v796 = vadd.f32 %v732, 0.7978846
        %v797 = vadd.f32 %v733, 0.7978846
        %v798 = vadd.f32 %v734, 0.7978846
        %v799 = vadd.f32 %v735, 0.7978846
        %v800 = vadd.f32 %v736, 0.7978846
        %v801 = vadd.f32 %v737, 0.7978846
        %v802 = vadd.f32 %v738, 0.7978846
        %v803 = vadd.f32 %v739, 0.7978846
        %v804 = vadd.f32 %v740, 0.7978846
        %v805 = vadd.f32 %v741, 0.7978846
        %v806 = vadd.f32 %v742, 0.7978846
        %v807 = vadd.f32 %v743, 0.7978846
        %v808 = vadd.f32 %v744, 0.7978846
        %v809 = vadd.f32 %v745, 0.7978846
        %v810 = vadd.f32 %v746, 0.7978846
        %v811 = vadd.f32 %v747, 0.7978846
        %v812 = vadd.f32 %v748, 0.7978846
        %v813 = vadd.f32 %v749, 0.7978846
        %v814 = vadd.f32 %v750, 0.7978846
        %v815 = vmul.f32 %v455, %v751
        %v816 = vmul.f32 %v544, %v752
        %v817 = vmul.f32 %v457, %v753
        %v818 = vmul.f32 %v546, %v754
        %v819 = vmul.f32 %v460, %v755
        %v820 = vmul.f32 %v549, %v756
        %v821 = vmul.f32 %v462, %v757
        %v822 = vmul.f32 %v551, %v758
        %v823 = vmul.f32 %v465, %v759
        %v824 = vmul.f32 %v554, %v760
        %v825 = vmul.f32 %v467, %v761
        %v826 = vmul.f32 %v556, %v762
        %v827 = vmul.f32 %v470, %v763
        %v828 = vmul.f32 %v559, %v764
        %v829 = vmul.f32 %v472, %v765
        %v830 = vmul.f32 %v561, %v766
        %v831 = vmul.f32 %v475, %v767
        %v832 = vmul.f32 %v564, %v768
        %v833 = vmul.f32 %v477, %v769
        %v834 = vmul.f32 %v566, %v770
        %v835 = vmul.f32 %v480, %v771
        %v836 = vmul.f32 %v569, %v772
        %v837 = vmul.f32 %v482, %v773
        %v838 = vmul.f32 %v571, %v774
        %v839 = vmul.f32 %v485, %v775
        %v840 = vmul.f32 %v574, %v776
        %v841 = vmul.f32 %v487, %v777
        %v842 = vmul.f32 %v576, %v778
        %v843 = vmul.f32 %v490, %v779
        %v844 = vmul.f32 %v579, %v780
        %v845 = vmul.f32 %v492, %v781
        %v846 = vmul.f32 %v581, %v782
        %v847 = vmul.f32 %v495, %v783
        %v848 = vmul.f32 %v584, %v784
        %v849 = vmul.f32 %v497, %v785
        %v850 = vmul.f32 %v586, %v786
        %v851 = vmul.f32 %v500, %v787
        %v852 = vmul.f32 %v589, %v788
        %v853 = vmul.f32 %v502, %v789
        %v854 = vmul.f32 %v591, %v790
        %v855 = vmul.f32 %v505, %v791
        %v856 = vmul.f32 %v594, %v792
        %v857 = vmul.f32 %v507, %v793
        %v858 = vmul.f32 %v596, %v794
        %v859 = vmul.f32 %v510, %v795
        %v860 = vmul.f32 %v599, %v796
        %v861 = vmul.f32 %v512, %v797
        %v862 = vmul.f32 %v601, %v798
        %v863 = vmul.f32 %v515, %v799
        %v864 = vmul.f32 %v604, %v800
        %v865 = vmul.f32 %v517, %v801
        %v866 = vmul.f32 %v606, %v802
        %v867 = vmul.f32 %v520, %v803
        %v868 = vmul.f32 %v609, %v804
        %v869 = vmul.f32 %v522, %v805
        %v870 = vmul.f32 %v611, %v806
        %v871 = vmul.f32 %v525, %v807
        %v872 = vmul.f32 %v614, %v808
        %v873 = vmul.f32 %v527, %v809
        %v874 = vmul.f32 %v616, %v810
        %v875 = vmul.f32 %v530, %v811
        %v876 = vmul.f32 %v619, %v812
        %v877 = vmul.f32 %v532, %v813
        %v878 = vmul.f32 %v621, %v814
        %v879 = vtanh.pop %v815
        %v880 = vtanh.pop %v816
        %v881 = vtanh.pop %v817
        %v882 = vtanh.pop %v818
        %v883 = vtanh.pop %v819
        %v884 = vtanh.pop %v820
        %v885 = vtanh.pop %v821
        %v886 = vtanh.pop %v822
        %v887 = vtanh.pop %v823
        %v888 = vtanh.pop %v824
        %v889 = vtanh.pop %v825
        %v890 = vtanh.pop %v826
        %v891 = vtanh.pop %v827
        %v892 = vtanh.pop %v828
        %v893 = vtanh.pop %v829
        %v894 = vtanh.pop %v830
        %v895 = vtanh.pop %v831
        %v896 = vtanh.pop %v832
        %v897 = vtanh.pop %v833
        %v898 = vtanh.pop %v834
        %v899 = vtanh.pop %v835
        %v900 = vtanh.pop %v836
        %v901 = vtanh.pop %v837
        %v902 = vtanh.pop %v838
        %v903 = vtanh.pop %v839
        %v904 = vtanh.pop %v840
        %v905 = vtanh.pop %v841
        %v906 = vtanh.pop %v842
        %v907 = vtanh.pop %v843
        %v908 = vtanh.pop %v844
        %v909 = vtanh.pop %v845
        %v910 = vtanh.pop %v846
        %v911 = vtanh.pop %v847
        %v912 = vtanh.pop %v848
        %v913 = vtanh.pop %v849
        %v914 = vtanh.pop %v850
        %v915 = vtanh.pop %v851
        %v916 = vtanh.pop %v852
        %v917 = vtanh.pop %v853
        %v918 = vtanh.pop %v854
        %v919 = vtanh.pop %v855
        %v920 = vtanh.pop %v856
        %v921 = vtanh.pop %v857
        %v922 = vtanh.pop %v858
        %v923 = vtanh.pop %v859
        %v924 = vtanh.pop %v860
        %v925 = vtanh.pop %v861
        %v926 = vtanh.pop %v862
        %v927 = vtanh.pop %v863
        %v928 = vtanh.pop %v864
        %v929 = vtanh.pop %v865
        %v930 = vtanh.pop %v866
        %v931 = vtanh.pop %v867
        %v932 = vtanh.pop %v868
        %v933 = vtanh.pop %v869
        %v934 = vtanh.pop %v870
        %v935 = vtanh.pop %v871
        %v936 = vtanh.pop %v872
        %v937 = vtanh.pop %v873
        %v938 = vtanh.pop %v874
        %v939 = vtanh.pop %v875
        %v940 = vtanh.pop %v876
        %v941 = vtanh.pop %v877
        %v942 = vtanh.pop %v878
        %v943 = vmul.f32 %v455, 0.5
        %v944 = vmul.f32 %v544, 0.5
        %v945 = vmul.f32 %v457, 0.5
        %v946 = vmul.f32 %v546, 0.5
        %v947 = vmul.f32 %v460, 0.5
        %v948 = vmul.f32 %v549, 0.5
        %v949 = vmul.f32 %v462, 0.5
        %v950 = vmul.f32 %v551, 0.5
        %v951 = vmul.f32 %v465, 0.5
        %v952 = vmul.f32 %v554, 0.5
        %v953 = vmul.f32 %v467, 0.5
        %v954 = vmul.f32 %v556, 0.5
        %v955 = vmul.f32 %v470, 0.5
        %v956 = vmul.f32 %v559, 0.5
        %v957 = vmul.f32 %v472, 0.5
        %v958 = vmul.f32 %v561, 0.5
        %v959 = vmul.f32 %v475, 0.5
        %v960 = vmul.f32 %v564, 0.5
        %v961 = vmul.f32 %v477, 0.5
        %v962 = vmul.f32 %v566, 0.5
        %v963 = vmul.f32 %v480, 0.5
        %v964 = vmul.f32 %v569, 0.5
        %v965 = vmul.f32 %v482, 0.5
        %v966 = vmul.f32 %v571, 0.5
        %v967 = vmul.f32 %v485, 0.5
        %v968 = vmul.f32 %v574, 0.5
        %v969 = vmul.f32 %v487, 0.5
        %v970 = vmul.f32 %v576, 0.5
        %v971 = vmul.f32 %v490, 0.5
        %v972 = vmul.f32 %v579, 0.5
        %v973 = vmul.f32 %v492, 0.5
        %v974 = vmul.f32 %v581, 0.5
        %v975 = vmul.f32 %v495, 0.5
        %v976 = vmul.f32 %v584, 0.5
        %v977 = vmul.f32 %v497, 0.5
        %v978 = vmul.f32 %v586, 0.5
        %v979 = vmul.f32 %v500, 0.5
        %v980 = vmul.f32 %v589, 0.5
        %v981 = vmul.f32 %v502, 0.5
        %v982 = vmul.f32 %v591, 0.5
        %v983 = vmul.f32 %v505, 0.5
        %v984 = vmul.f32 %v594, 0.5
        %v985 = vmul.f32 %v507, 0.5
        %v986 = vmul.f32 %v596, 0.5
        %v987 = vmul.f32 %v510, 0.5
        %v988 = vmul.f32 %v599, 0.5
        %v989 = vmul.f32 %v512, 0.5
        %v990 = vmul.f32 %v601, 0.5
        %v991 = vmul.f32 %v515, 0.5
        %v992 = vmul.f32 %v604, 0.5
        %v993 = vmul.f32 %v517, 0.5
        %v994 = vmul.f32 %v606, 0.5
        %v995 = vmul.f32 %v520, 0.5
        %v996 = vmul.f32 %v609, 0.5
        %v997 = vmul.f32 %v522, 0.5
        %v998 = vmul.f32 %v611, 0.5
        %v999 = vmul.f32 %v525, 0.5
        %v1000 = vmul.f32 %v614, 0.5
        %v1001 = vmul.f32 %v527, 0.5
        %v1002 = vmul.f32 %v616, 0.5
        %v1003 = vmul.f32 %v530, 0.5
        %v1004 = vmul.f32 %v619, 0.5
        %v1005 = vmul.f32 %v532, 0.5
        %v1006 = vmul.f32 %v621, 0.5
        %v1007 = vadd.f32 %v879, 1.0
        %v1008 = vadd.f32 %v880, 1.0
        %v1009 = vadd.f32 %v881, 1.0
        %v1010 = vadd.f32 %v882, 1.0
        %v1011 = vadd.f32 %v883, 1.0
        %v1012 = vadd.f32 %v884, 1.0
        %v1013 = vadd.f32 %v885, 1.0
        %v1014 = vadd.f32 %v886, 1.0
        %v1015 = vadd.f32 %v887, 1.0
        %v1016 = vadd.f32 %v888, 1.0
        %v1017 = vadd.f32 %v889, 1.0
        %v1018 = vadd.f32 %v890, 1.0
        %v1019 = vadd.f32 %v891, 1.0
        %v1020 = vadd.f32 %v892, 1.0
        %v1021 = vadd.f32 %v893, 1.0
        %v1022 = vadd.f32 %v894, 1.0
        %v1023 = vadd.f32 %v895, 1.0
        %v1024 = vadd.f32 %v896, 1.0
        %v1025 = vadd.f32 %v897, 1.0
        %v1026 = vadd.f32 %v898, 1.0
        %v1027 = vadd.f32 %v899, 1.0
        %v1028 = vadd.f32 %v900, 1.0
        %v1029 = vadd.f32 %v901, 1.0
        %v1030 = vadd.f32 %v902, 1.0
        %v1031 = vadd.f32 %v903, 1.0
        %v1032 = vadd.f32 %v904, 1.0
        %v1033 = vadd.f32 %v905, 1.0
        %v1034 = vadd.f32 %v906, 1.0
        %v1035 = vadd.f32 %v907, 1.0
        %v1036 = vadd.f32 %v908, 1.0
        %v1037 = vadd.f32 %v909, 1.0
        %v1038 = vadd.f32 %v910, 1.0
        %v1039 = vadd.f32 %v911, 1.0
        %v1040 = vadd.f32 %v912, 1.0
        %v1041 = vadd.f32 %v913, 1.0
        %v1042 = vadd.f32 %v914, 1.0
        %v1043 = vadd.f32 %v915, 1.0
        %v1044 = vadd.f32 %v916, 1.0
        %v1045 = vadd.f32 %v917, 1.0
        %v1046 = vadd.f32 %v918, 1.0
        %v1047 = vadd.f32 %v919, 1.0
        %v1048 = vadd.f32 %v920, 1.0
        %v1049 = vadd.f32 %v921, 1.0
        %v1050 = vadd.f32 %v922, 1.0
        %v1051 = vadd.f32 %v923, 1.0
        %v1052 = vadd.f32 %v924, 1.0
        %v1053 = vadd.f32 %v925, 1.0
        %v1054 = vadd.f32 %v926, 1.0
        %v1055 = vadd.f32 %v927, 1.0
        %v1056 = vadd.f32 %v928, 1.0
        %v1057 = vadd.f32 %v929, 1.0
        %v1058 = vadd.f32 %v930, 1.0
        %v1059 = vadd.f32 %v931, 1.0
        %v1060 = vadd.f32 %v932, 1.0
        %v1061 = vadd.f32 %v933, 1.0
        %v1062 = vadd.f32 %v934, 1.0
        %v1063 = vadd.f32 %v935, 1.0
        %v1064 = vadd.f32 %v936, 1.0
        %v1065 = vadd.f32 %v937, 1.0
        %v1066 = vadd.f32 %v938, 1.0
        %v1067 = vadd.f32 %v939, 1.0
        %v1068 = vadd.f32 %v940, 1.0
        %v1069 = vadd.f32 %v941, 1.0
        %v1070 = vadd.f32 %v942, 1.0
        %v1071 = vmul.f32 %v943, %v1007
        %v1072 = vmul.f32 %v944, %v1008
        %v1073 = vmul.f32 %v945, %v1009
        %v1074 = vmul.f32 %v946, %v1010
        %v1075 = vmul.f32 %v947, %v1011
        %v1076 = vmul.f32 %v948, %v1012
        %v1077 = vmul.f32 %v949, %v1013
        %v1078 = vmul.f32 %v950, %v1014
        %v1079 = vmul.f32 %v951, %v1015
        %v1080 = vmul.f32 %v952, %v1016
        %v1081 = vmul.f32 %v953, %v1017
        %v1082 = vmul.f32 %v954, %v1018
        %v1083 = vmul.f32 %v955, %v1019
        %v1084 = vmul.f32 %v956, %v1020
        %v1085 = vmul.f32 %v957, %v1021
        %v1086 = vmul.f32 %v958, %v1022
        %v1087 = vmul.f32 %v959, %v1023
        %v1088 = vmul.f32 %v960, %v1024
        %v1089 = vmul.f32 %v961, %v1025
        %v1090 = vmul.f32 %v962, %v1026
        %v1091 = vmul.f32 %v963, %v1027
        %v1092 = vmul.f32 %v964, %v1028
        %v1093 = vmul.f32 %v965, %v1029
        %v1094 = vmul.f32 %v966, %v1030
        %v1095 = vmul.f32 %v967, %v1031
        %v1096 = vmul.f32 %v968, %v1032
        %v1097 = vmul.f32 %v969, %v1033
        %v1098 = vmul.f32 %v970, %v1034
        %v1099 = vmul.f32 %v971, %v1035
        %v1100 = vmul.f32 %v972, %v1036
        %v1101 = vmul.f32 %v973, %v1037
        %v1102 = vmul.f32 %v974, %v1038
        %v1103 = vmul.f32 %v975, %v1039
        %v1104 = vmul.f32 %v976, %v1040
        %v1105 = vmul.f32 %v977, %v1041
        %v1106 = vmul.f32 %v978, %v1042
        %v1107 = vmul.f32 %v979, %v1043
        %v1108 = vmul.f32 %v980, %v1044
        %v1109 = vmul.f32 %v981, %v1045
        %v1110 = vmul.f32 %v982, %v1046
        %v1111 = vmul.f32 %v983, %v1047
        %v1112 = vmul.f32 %v984, %v1048
        %v1113 = vmul.f32 %v985, %v1049
        %v1114 = vmul.f32 %v986, %v1050
        %v1115 = vmul.f32 %v987, %v1051
        %v1116 = vmul.f32 %v988, %v1052
        %v1117 = vmul.f32 %v989, %v1053
        %v1118 = vmul.f32 %v990, %v1054
        %v1119 = vmul.f32 %v991, %v1055
        %v1120 = vmul.f32 %v992, %v1056
        %v1121 = vmul.f32 %v993, %v1057
        %v1122 = vmul.f32 %v994, %v1058
        %v1123 = vmul.f32 %v995, %v1059
        %v1124 = vmul.f32 %v996, %v1060
        %v1125 = vmul.f32 %v997, %v1061
        %v1126 = vmul.f32 %v998, %v1062
        %v1127 = vmul.f32 %v999, %v1063
        %v1128 = vmul.f32 %v1000, %v1064
        %v1129 = vmul.f32 %v1001, %v1065
        %v1130 = vmul.f32 %v1002, %v1066
        %v1131 = vmul.f32 %v1003, %v1067
        %v1132 = vmul.f32 %v1004, %v1068
        %v1133 = vmul.f32 %v1005, %v1069
        %v1134 = vmul.f32 %v1006, %v1070
        %v1135 = vpack.c.bf16 %v1073, %v1071
        %v1136 = vpack.c.bf16 %v1074, %v1072
        %v1137 = vpack.c.bf16 %v1077, %v1075
        %v1138 = vpack.c.bf16 %v1078, %v1076
        %v1139 = vpack.c.bf16 %v1081, %v1079
        %v1140 = vpack.c.bf16 %v1082, %v1080
        %v1141 = vpack.c.bf16 %v1085, %v1083
        %v1142 = vpack.c.bf16 %v1086, %v1084
        %v1143 = vpack.c.bf16 %v1089, %v1087
        %v1144 = vpack.c.bf16 %v1090, %v1088
        %v1145 = vpack.c.bf16 %v1093, %v1091
        %v1146 = vpack.c.bf16 %v1094, %v1092
        %v1147 = vpack.c.bf16 %v1097, %v1095
        %v1148 = vpack.c.bf16 %v1098, %v1096
        %v1149 = vpack.c.bf16 %v1101, %v1099
        %v1150 = vpack.c.bf16 %v1102, %v1100
        %v1151 = vpack.c.bf16 %v1105, %v1103
        %v1152 = vpack.c.bf16 %v1106, %v1104
        %v1153 = vpack.c.bf16 %v1109, %v1107
        %v1154 = vpack.c.bf16 %v1110, %v1108
        %v1155 = vpack.c.bf16 %v1113, %v1111
        %v1156 = vpack.c.bf16 %v1114, %v1112
        %v1157 = vpack.c.bf16 %v1117, %v1115
        %v1158 = vpack.c.bf16 %v1118, %v1116
        %v1159 = vpack.c.bf16 %v1121, %v1119
        %v1160 = vpack.c.bf16 %v1122, %v1120
        %v1161 = vpack.c.bf16 %v1125, %v1123
        %v1162 = vpack.c.bf16 %v1126, %v1124
        %v1163 = vpack.c.bf16 %v1129, %v1127
        %v1164 = vpack.c.bf16 %v1130, %v1128
        %v1165 = vpack.c.bf16 %v1133, %v1131
        %v1166 = vpack.c.bf16 %v1134, %v1132
        %v1167 = vld [vmem:[#allocation8] sm:$0xf]
        %v1168 = vld [vmem:[#allocation8 + $0x4] sm:$0xf]
        %v1169 = vld [vmem:[#allocation8 + $0x8] sm:$0xf]
        %v1170 = vld [vmem:[#allocation8 + $0xc] sm:$0xf]
        %v1171 = vld [vmem:[#allocation8 + $0x10] sm:$0xf]
        %v1172 = vld [vmem:[#allocation8 + $0x14] sm:$0xf]
        %v1173 = vld [vmem:[#allocation8 + $0x18] sm:$0xf]
        %v1174 = vld [vmem:[#allocation8 + $0x1c] sm:$0xf]
        %v1175 = vld [vmem:[#allocation8 + $0x20] sm:$0xf]
        %v1176 = vld [vmem:[#allocation8 + $0x24] sm:$0xf]
        %v1177 = vld [vmem:[#allocation8 + $0x28] sm:$0xf]
        %v1178 = vld [vmem:[#allocation8 + $0x2c] sm:$0xf]
        %v1179 = vld [vmem:[#allocation8 + $0x30] sm:$0xf]
        %v1180 = vld [vmem:[#allocation8 + $0x34] sm:$0xf]
        %v1181 = vld [vmem:[#allocation8 + $0x38] sm:$0xf]
        %v1182 = vld [vmem:[#allocation8 + $0x3c] sm:$0xf]
        %v1183 = vld [vmem:[#allocation8 + $0x40] sm:$0xf]
        %v1184 = vld [vmem:[#allocation8 + $0x44] sm:$0xf]
        %v1185 = vld [vmem:[#allocation8 + $0x48] sm:$0xf]
        %v1186 = vld [vmem:[#allocation8 + $0x4c] sm:$0xf]
        %v1187 = vld [vmem:[#allocation8 + $0x50] sm:$0xf]
        %v1188 = vld [vmem:[#allocation8 + $0x54] sm:$0xf]
        %v1189 = vld [vmem:[#allocation8 + $0x58] sm:$0xf]
        %v1190 = vld [vmem:[#allocation8 + $0x5c] sm:$0xf]
        %v1191 = vld [vmem:[#allocation8 + $0x60] sm:$0xf]
        %v1192 = vld [vmem:[#allocation8 + $0x64] sm:$0xf]
        %v1193 = vld [vmem:[#allocation8 + $0x68] sm:$0xf]
        %v1194 = vld [vmem:[#allocation8 + $0x6c] sm:$0xf]
        %v1195 = vld [vmem:[#allocation8 + $0x70] sm:$0xf]
        %v1196 = vld [vmem:[#allocation8 + $0x74] sm:$0xf]
        %v1197 = vld [vmem:[#allocation8 + $0x78] sm:$0xf]
        %v1198 = vld [vmem:[#allocation8 + $0x7c] sm:$0xf]
        %v1199 = vld [vmem:[%s4] sm:$0x1]
        %v1201 = vperm.slane %v1199, 0
        %v1235 = vunpack.c.l.b16 %v1167
        %v1236 = vunpack.c.l.b16 %v1168
        %v1237 = vunpack.c.l.b16 %v1169
        %v1238 = vunpack.c.l.b16 %v1170
        %v1239 = vunpack.c.l.b16 %v1171
        %v1240 = vunpack.c.l.b16 %v1172
        %v1241 = vunpack.c.l.b16 %v1173
        %v1242 = vunpack.c.l.b16 %v1174
        %v1243 = vunpack.c.l.b16 %v1175
        %v1244 = vunpack.c.l.b16 %v1176
        %v1245 = vunpack.c.l.b16 %v1177
        %v1246 = vunpack.c.l.b16 %v1178
        %v1247 = vunpack.c.l.b16 %v1179
        %v1248 = vunpack.c.l.b16 %v1180
        %v1249 = vunpack.c.l.b16 %v1181
        %v1250 = vunpack.c.l.b16 %v1182
        %v1251 = vunpack.c.l.b16 %v1183
        %v1252 = vunpack.c.l.b16 %v1184
        %v1253 = vunpack.c.l.b16 %v1185
        %v1254 = vunpack.c.l.b16 %v1186
        %v1255 = vunpack.c.l.b16 %v1187
        %v1256 = vunpack.c.l.b16 %v1188
        %v1257 = vunpack.c.l.b16 %v1189
        %v1258 = vunpack.c.l.b16 %v1190
        %v1259 = vunpack.c.l.b16 %v1191
        %v1260 = vunpack.c.l.b16 %v1192
        %v1261 = vunpack.c.l.b16 %v1193
        %v1262 = vunpack.c.l.b16 %v1194
        %v1263 = vunpack.c.l.b16 %v1195
        %v1264 = vunpack.c.l.b16 %v1196
        %v1265 = vunpack.c.l.b16 %v1197
        %v1266 = vunpack.c.l.b16 %v1198
        %v1267 = vpack.c.b16 %v1236, %v1235
        %v1268 = vpack.c.b16 %v1238, %v1237
        %v1269 = vpack.c.b16 %v1240, %v1239
        %v1270 = vpack.c.b16 %v1242, %v1241
        %v1271 = vpack.c.b16 %v1244, %v1243
        %v1272 = vpack.c.b16 %v1246, %v1245
        %v1273 = vpack.c.b16 %v1248, %v1247
        %v1274 = vpack.c.b16 %v1250, %v1249
        %v1275 = vpack.c.b16 %v1252, %v1251
        %v1276 = vpack.c.b16 %v1254, %v1253
        %v1277 = vpack.c.b16 %v1256, %v1255
        %v1278 = vpack.c.b16 %v1258, %v1257
        %v1279 = vpack.c.b16 %v1260, %v1259
        %v1280 = vpack.c.b16 %v1262, %v1261
        %v1281 = vpack.c.b16 %v1264, %v1263
        %v1282 = vpack.c.b16 %v1266, %v1265
        %1299 = vmatpush.bf16.msra.mxu0 %v1274
        %1300 = vmatpush.bf16.msra.mxu0 %v1273
        %1301 = vmatpush.bf16.msra.mxu0 %v1272
        %1302 = vmatpush.bf16.msra.mxu0 %v1271
        %1303 = vmatpush.bf16.msra.mxu0 %v1270
        %1304 = vmatpush.bf16.msra.mxu0 %v1269
        %1305 = vmatpush.bf16.msra.mxu0 %v1268
        %1306 = vmatpush.bf16.msra.mxu0 %v1267
        %1307 = vmatmul.bf16.gmra.mxu0 %v1135
        %v1308 = vpop.f32.mrf.mxu0
        %v1309 = vadd.f32 %v1201, %v1308
        %v1310 = vpop.f32.mrf.mxu0
        %v1311 = vadd.f32 %v1201, %v1310
        %1312 = vmatmul.bf16.gmra.mxu0 %v1137
        %v1313 = vpop.f32.mrf.mxu0
        %v1314 = vadd.f32 %v1201, %v1313
        %v1315 = vpop.f32.mrf.mxu0
        %v1316 = vadd.f32 %v1201, %v1315
        %1317 = vmatmul.bf16.gmra.mxu0 %v1139
        %v1318 = vpop.f32.mrf.mxu0
        %v1319 = vadd.f32 %v1201, %v1318
        %v1320 = vpop.f32.mrf.mxu0
        %v1321 = vadd.f32 %v1201, %v1320
        %1322 = vmatmul.bf16.gmra.mxu0 %v1141
        %v1323 = vpop.f32.mrf.mxu0
        %v1324 = vadd.f32 %v1201, %v1323
        %v1325 = vpop.f32.mrf.mxu0
        %v1326 = vadd.f32 %v1201, %v1325
        %1327 = vmatmul.bf16.gmra.mxu0 %v1143
        %v1328 = vpop.f32.mrf.mxu0
        %v1329 = vadd.f32 %v1201, %v1328
        %v1330 = vpop.f32.mrf.mxu0
        %v1331 = vadd.f32 %v1201, %v1330
        %1332 = vmatmul.bf16.gmra.mxu0 %v1145
        %v1333 = vpop.f32.mrf.mxu0
        %v1334 = vadd.f32 %v1201, %v1333
        %v1335 = vpop.f32.mrf.mxu0
        %v1336 = vadd.f32 %v1201, %v1335
        %1337 = vmatmul.bf16.gmra.mxu0 %v1147
        %v1338 = vpop.f32.mrf.mxu0
        %v1339 = vadd.f32 %v1201, %v1338
        %v1340 = vpop.f32.mrf.mxu0
        %v1341 = vadd.f32 %v1201, %v1340
        %1342 = vmatmul.bf16.gmra.mxu0 %v1149
        %v1343 = vpop.f32.mrf.mxu0
        %v1344 = vadd.f32 %v1201, %v1343
        %v1345 = vpop.f32.mrf.mxu0
        %v1346 = vadd.f32 %v1201, %v1345
        %1347 = vmatmul.bf16.gmra.mxu0 %v1151
        %v1348 = vpop.f32.mrf.mxu0
        %v1349 = vadd.f32 %v1201, %v1348
        %v1350 = vpop.f32.mrf.mxu0
        %v1351 = vadd.f32 %v1201, %v1350
        %1352 = vmatmul.bf16.gmra.mxu0 %v1153
        %v1353 = vpop.f32.mrf.mxu0
        %v1354 = vadd.f32 %v1201, %v1353
        %v1355 = vpop.f32.mrf.mxu0
        %v1356 = vadd.f32 %v1201, %v1355
        %1357 = vmatmul.bf16.gmra.mxu0 %v1155
        %v1358 = vpop.f32.mrf.mxu0
        %v1359 = vadd.f32 %v1201, %v1358
        %v1360 = vpop.f32.mrf.mxu0
        %v1361 = vadd.f32 %v1201, %v1360
        %1362 = vmatmul.bf16.gmra.mxu0 %v1157
        %v1363 = vpop.f32.mrf.mxu0
        %v1364 = vadd.f32 %v1201, %v1363
        %v1365 = vpop.f32.mrf.mxu0
        %v1366 = vadd.f32 %v1201, %v1365
        %1367 = vmatmul.bf16.gmra.mxu0 %v1159
        %v1368 = vpop.f32.mrf.mxu0
        %v1369 = vadd.f32 %v1201, %v1368
        %v1370 = vpop.f32.mrf.mxu0
        %v1371 = vadd.f32 %v1201, %v1370
        %1372 = vmatmul.bf16.gmra.mxu0 %v1161
        %v1373 = vpop.f32.mrf.mxu0
        %v1374 = vadd.f32 %v1201, %v1373
        %v1375 = vpop.f32.mrf.mxu0
        %v1376 = vadd.f32 %v1201, %v1375
        %1377 = vmatmul.bf16.gmra.mxu0 %v1163
        %v1378 = vpop.f32.mrf.mxu0
        %v1379 = vadd.f32 %v1201, %v1378
        %v1380 = vpop.f32.mrf.mxu0
        %v1381 = vadd.f32 %v1201, %v1380
        %1382 = vmatmul.bf16.gmra.mxu0 %v1165
        %v1383 = vpop.f32.mrf.mxu0
        %v1384 = vadd.f32 %v1201, %v1383
        %v1385 = vpop.f32.mrf.mxu0
        %v1386 = vadd.f32 %v1201, %v1385
        %1387 = vdwg.mxu0
        %1388 = vmatpush.bf16.msra.mxu0 %v1282
        %1389 = vmatpush.bf16.msra.mxu0 %v1281
        %1390 = vmatpush.bf16.msra.mxu0 %v1280
        %1391 = vmatpush.bf16.msra.mxu0 %v1279
        %1392 = vmatpush.bf16.msra.mxu0 %v1278
        %1393 = vmatpush.bf16.msra.mxu0 %v1277
        %1394 = vmatpush.bf16.msra.mxu0 %v1276
        %1395 = vmatpush.bf16.msra.mxu0 %v1275
        %1396 = vmatmul.bf16.gmra.mxu0 %v1136
        %v1397 = vpop.f32.mrf.mxu0
        %v1398 = vadd.f32 %v1309, %v1397
        %v1399 = vpop.f32.mrf.mxu0
        %v1400 = vadd.f32 %v1311, %v1399
        %1401 = vmatmul.bf16.gmra.mxu0 %v1138
        %v1402 = vpop.f32.mrf.mxu0
        %v1403 = vadd.f32 %v1314, %v1402
        %v1404 = vpop.f32.mrf.mxu0
        %v1405 = vadd.f32 %v1316, %v1404
        %1406 = vmatmul.bf16.gmra.mxu0 %v1140
        %v1407 = vpop.f32.mrf.mxu0
        %v1408 = vadd.f32 %v1319, %v1407
        %v1409 = vpop.f32.mrf.mxu0
        %v1410 = vadd.f32 %v1321, %v1409
        %1411 = vmatmul.bf16.gmra.mxu0 %v1142
        %v1412 = vpop.f32.mrf.mxu0
        %v1413 = vadd.f32 %v1324, %v1412
        %v1414 = vpop.f32.mrf.mxu0
        %v1415 = vadd.f32 %v1326, %v1414
        %1416 = vmatmul.bf16.gmra.mxu0 %v1144
        %v1417 = vpop.f32.mrf.mxu0
        %v1418 = vadd.f32 %v1329, %v1417
        %v1419 = vpop.f32.mrf.mxu0
        %v1420 = vadd.f32 %v1331, %v1419
        %1421 = vmatmul.bf16.gmra.mxu0 %v1146
        %v1422 = vpop.f32.mrf.mxu0
        %v1423 = vadd.f32 %v1334, %v1422
        %v1424 = vpop.f32.mrf.mxu0
        %v1425 = vadd.f32 %v1336, %v1424
        %1426 = vmatmul.bf16.gmra.mxu0 %v1148
        %v1427 = vpop.f32.mrf.mxu0
        %v1428 = vadd.f32 %v1339, %v1427
        %v1429 = vpop.f32.mrf.mxu0
        %v1430 = vadd.f32 %v1341, %v1429
        %1431 = vmatmul.bf16.gmra.mxu0 %v1150
        %v1432 = vpop.f32.mrf.mxu0
        %v1433 = vadd.f32 %v1344, %v1432
        %v1434 = vpop.f32.mrf.mxu0
        %v1435 = vadd.f32 %v1346, %v1434
        %1436 = vmatmul.bf16.gmra.mxu0 %v1152
        %v1437 = vpop.f32.mrf.mxu0
        %v1438 = vadd.f32 %v1349, %v1437
        %v1439 = vpop.f32.mrf.mxu0
        %v1440 = vadd.f32 %v1351, %v1439
        %1441 = vmatmul.bf16.gmra.mxu0 %v1154
        %v1442 = vpop.f32.mrf.mxu0
        %v1443 = vadd.f32 %v1354, %v1442
        %v1444 = vpop.f32.mrf.mxu0
        %v1445 = vadd.f32 %v1356, %v1444
        %1446 = vmatmul.bf16.gmra.mxu0 %v1156
        %v1447 = vpop.f32.mrf.mxu0
        %v1448 = vadd.f32 %v1359, %v1447
        %v1449 = vpop.f32.mrf.mxu0
        %v1450 = vadd.f32 %v1361, %v1449
        %1451 = vmatmul.bf16.gmra.mxu0 %v1158
        %v1452 = vpop.f32.mrf.mxu0
        %v1453 = vadd.f32 %v1364, %v1452
        %v1454 = vpop.f32.mrf.mxu0
        %v1455 = vadd.f32 %v1366, %v1454
        %1456 = vmatmul.bf16.gmra.mxu0 %v1160
        %v1457 = vpop.f32.mrf.mxu0
        %v1458 = vadd.f32 %v1369, %v1457
        %v1459 = vpop.f32.mrf.mxu0
        %v1460 = vadd.f32 %v1371, %v1459
        %1461 = vmatmul.bf16.gmra.mxu0 %v1162
        %v1462 = vpop.f32.mrf.mxu0
        %v1463 = vadd.f32 %v1374, %v1462
        %v1464 = vpop.f32.mrf.mxu0
        %v1465 = vadd.f32 %v1376, %v1464
        %1466 = vmatmul.bf16.gmra.mxu0 %v1164
        %v1467 = vpop.f32.mrf.mxu0
        %v1468 = vadd.f32 %v1379, %v1467
        %v1469 = vpop.f32.mrf.mxu0
        %v1470 = vadd.f32 %v1381, %v1469
        %1471 = vmatmul.bf16.gmra.mxu0 %v1166
        %v1472 = vpop.f32.mrf.mxu0
        %v1473 = vadd.f32 %v1384, %v1472
        %v1474 = vpop.f32.mrf.mxu0
        %v1475 = vadd.f32 %v1386, %v1474
        %1476 = vdwg.mxu0
        %1477 = vst [vmem:[%s292] sm:$0xff] %v1398
        %1478 = vst [vmem:[%s292 + $0x8] sm:$0xff] %v1400
        %1479 = vst [vmem:[%s292 + $0x10] sm:$0xff] %v1403
        %1480 = vst [vmem:[%s292 + $0x18] sm:$0xff] %v1405
        %1481 = vst [vmem:[%s292 + $0x20] sm:$0xff] %v1408
        %1482 = vst [vmem:[%s292 + $0x28] sm:$0xff] %v1410
        %1483 = vst [vmem:[%s292 + $0x30] sm:$0xff] %v1413
        %1484 = vst [vmem:[%s292 + $0x38] sm:$0xff] %v1415
        %1485 = vst [vmem:[%s292 + $0x40] sm:$0xff] %v1418
        %1486 = vst [vmem:[%s292 + $0x48] sm:$0xff] %v1420
        %1487 = vst [vmem:[%s292 + $0x50] sm:$0xff] %v1423
        %1488 = vst [vmem:[%s292 + $0x58] sm:$0xff] %v1425
        %1489 = vst [vmem:[%s292 + $0x60] sm:$0xff] %v1428
        %1490 = vst [vmem:[%s292 + $0x68] sm:$0xff] %v1430
        %1491 = vst [vmem:[%s292 + $0x70] sm:$0xff] %v1433
        %1492 = vst [vmem:[%s292 + $0x78] sm:$0xff] %v1435
        %1493 = vst [vmem:[%s292 + $0x80] sm:$0xff] %v1438
        %1494 = vst [vmem:[%s292 + $0x88] sm:$0xff] %v1440
        %1495 = vst [vmem:[%s292 + $0x90] sm:$0xff] %v1443
        %1496 = vst [vmem:[%s292 + $0x98] sm:$0xff] %v1445
        %1497 = vst [vmem:[%s292 + $0xa0] sm:$0xff] %v1448
        %1498 = vst [vmem:[%s292 + $0xa8] sm:$0xff] %v1450
        %1499 = vst [vmem:[%s292 + $0xb0] sm:$0xff] %v1453
        %1500 = vst [vmem:[%s292 + $0xb8] sm:$0xff] %v1455
        %1501 = vst [vmem:[%s292 + $0xc0] sm:$0xff] %v1458
        %1502 = vst [vmem:[%s292 + $0xc8] sm:$0xff] %v1460
        %1503 = vst [vmem:[%s292 + $0xd0] sm:$0xff] %v1463
        %1504 = vst [vmem:[%s292 + $0xd8] sm:$0xff] %v1465
        %1505 = vst [vmem:[%s292 + $0xe0] sm:$0xff] %v1468
        %1506 = vst [vmem:[%s292 + $0xe8] sm:$0xff] %v1470
        %1507 = vst [vmem:[%s292 + $0xf0] sm:$0xff] %v1473
        %1508 = vst [vmem:[%s292 + $0xf8] sm:$0xff] %v1475
        %s1509 = sand.u32 %s142, 1
        %s1510 = scalar_lea.sflag [#allocation4], %s1509
        %s1511 = sand.u32 %s142, 1
        %s1512 = smul.addr %s1511, 256
        %s1513 = scalar_lea.vmem [#allocation10], %s1512
        // Predicated region
        $region57: #{tpu_custom_call.1} parent=39 // pred_check
          %p1514 = pneg %p152
        $region58: #{tpu_custom_call.1} parent=39 // pred_check_branch
          %1516 = sbr.rel (%p1514) target = $region60
        $region59: #{tpu_custom_call.1} parent=39 // pred_region
          %s1517 = smul.u32 32, %s24
          %1519 = vsyncadd %s1510, 0
          %s1520 = smul.addr %s1517, 8
          %s1521 = scalar_lea.hbm %s5, %s1520
          %s1522 = sshll.u32 %s1513, 4
          %s1523 = int_to_ptr.vmem [resolvable:$true] %s1522
          %s1524 = sshll.u32 %s1521, 4
          %s1525 = int_to_ptr.hbm [resolvable:$true] %s1524
          %1530 = dma.vmem_to_hbm [thread:$0]  %s1523, 4096, %s1525, %s1510, 128, 128, 8
        $region60: #{tpu_custom_call.1} parent=39 // pred_fallthru
          _
      $region40: #{tpu_custom_call.1} parent=5 // pred_fallthru
        _
      %p1531 = scmp.le.s32.totalorder 2, %s19
      // Predicated region
      $region61: #{tpu_custom_call.1} parent=5 // pred_check
        %p1532 = pneg %p1531
      $region62: #{tpu_custom_call.1} parent=5 // pred_check_branch
        %1534 = sbr.rel (%p1532) target = $region64
      $region63: #{tpu_custom_call.1} parent=5 // pred_region
        %s1535 = ssub.s32 %s19, 2
        // Predicated region
        $region65: #{tpu_custom_call.1} parent=63 // pred_check
          %p1536 = pneg %p158
        $region66: #{tpu_custom_call.1} parent=63 // pred_check_branch
          %1538 = sbr.rel (%p1536) target = $region68
        $region67: #{tpu_custom_call.1} parent=63 // pred_region
          %s1539 = sand.u32 %s143, 1
          %s1540 = scalar_lea.sflag [#allocation4], %s1539
          %s1541 = sand.u32 %s143, 1
          %s1542 = smul.addr %s1541, 256
          %s1543 = scalar_lea.vmem [#allocation10], %s1542
          %1545 = dma.done %s1540, 4096
        $region68: #{tpu_custom_call.1} parent=63 // pred_fallthru
          _
      $region64: #{tpu_custom_call.1} parent=5 // pred_fallthru
        _
    $region6: #{tpu_custom_call.1} parent=1 // loop_footer
      %s23 = sadd.s32 1, %s19
    $region7: #{tpu_custom_call.1} parent=1 // loop_footer_branch
      %18 = sbr.rel target = $region3
    $region8: #{tpu_custom_call.1} parent=1 // loop_exit
      _
    %1546 = vsyncpa [#allocation3], 1
    %s1547 = scalar_lea.sflag [#allocation3], 1
    %1548 = vsyncpa %s1547, 1
    %1549 = vsyncpa [#allocation6], 1
    %1550 = vsyncpa [#allocation9], 1
    %1551 = vsyncpa [#allocation4], 1
    %s1552 = scalar_lea.sflag [#allocation4], 1
    %1553 = vsyncpa %s1552, 1

</llo_original>
